<compile_context>
chip_gen: v7x
topology: tpu7x:2x2x1
jax: 0.10.0
libtpu: 0.0.40
codegen_flags: <defaults>
</compile_context>

<pallas_src>
import functools

import numpy as np
import jax
import jax.numpy as jnp
from jax.experimental import pallas as pl
from jax.experimental.pallas import tpu as pltpu

try:
    from scipy.optimize import linear_sum_assignment as _lsa
except Exception:  # pragma: no cover
    _lsa = None


# ----------------------------------------------------------------------------
# Small helpers
# ----------------------------------------------------------------------------
def _round_up(x, m):
    return ((x + m - 1) // m) * m


def _static_pow(x, gamma):
    """x ** gamma with the exponent known at trace time; integer gammas are
    unrolled into multiplies (avoids exp(g*log(x)) on the EUP)."""
    g = float(gamma)
    if g == 0.0:
        return jnp.ones_like(x)
    if g == 1.0:
        return x
    if g == 2.0:
        return x * x
    if g.is_integer() and 2.0 < g <= 8.0:
        r = x
        for _ in range(int(g) - 1):
            r = r * x
        return r
    return x ** g


# ----------------------------------------------------------------------------
# Pallas kernel: per-image weighted matching cost tile  [tile_q, G_pad]
# ----------------------------------------------------------------------------
def _cost_kernel(logits_ref, boxes_ref, onehot_ref, tbox_ref, out_ref, *,
                 use_focal, alpha, gamma, w_class, w_bbox, w_giou):
    logits = logits_ref[0].astype(jnp.float32)   # [T, C]
    onehot = onehot_ref[0].astype(jnp.float32)   # [C, Gp]  (one-hot, transposed)

    # Gather the per-target-class logit via the MXU FIRST, then run the
    # transcendentals on the narrow [T, Gp] result instead of [T, C].
    z = jnp.dot(logits, onehot, preferred_element_type=jnp.float32)   # [T, Gp]

    if use_focal:
        p = jax.nn.sigmoid(z)
        omp = 1.0 - p
        p_g = _static_pow(p, gamma)
        omp_g = _static_pow(omp, gamma)
        neg = (1.0 - alpha) * p_g * (-jnp.log(omp + 1e-8))
        pos = alpha * omp_g * (-jnp.log(p + 1e-8))
        cost_class = pos - neg
    else:
        # softmax(logits)[:, tgt_ids] == exp(z - logsumexp(logits)) because the
        # one-hot matmul selects exactly one logit per target column.
        m = jnp.max(logits, axis=-1, keepdims=True)
        lse = m + jnp.log(jnp.sum(jnp.exp(logits - m), axis=-1, keepdims=True))
        cost_class = -jnp.exp(z - lse)

    # ---- box costs ----------------------------------------------------------
    b = boxes_ref[0].astype(jnp.float32)   # [T, 4] (cx, cy, w, h)
    t = tbox_ref[0].astype(jnp.float32)    # [8, Gp]: cx, cy, w, h, x0, y0, x1, y1

    bcx, bcy, bw, bh = b[:, 0:1], b[:, 1:2], b[:, 2:3], b[:, 3:4]      # [T, 1]
    tcx, tcy, tw, th = t[0:1, :], t[1:2, :], t[2:3, :], t[3:4, :]      # [1, Gp]
    tx0, ty0, tx1, ty1 = t[4:5, :], t[5:6, :], t[6:7, :], t[7:8, :]    # [1, Gp]

    # L1 cdist in cxcywh space (torch.cdist(..., p=1))
    cost_bbox = (jnp.abs(bcx - tcx) + jnp.abs(bcy - tcy)
                 + jnp.abs(bw - tw) + jnp.abs(bh - th))                # [T, Gp]

    # predicted cxcywh -> xyxy (target side precomputed in the wrapper)
    bx0, by0 = bcx - 0.5 * bw, bcy - 0.5 * bh
    bx1, by1 = bcx + 0.5 * bw, bcy + 0.5 * bh
    area_b = (bx1 - bx0) * (by1 - by0)     # [T, 1]
    area_t = (tx1 - tx0) * (ty1 - ty0)     # [1, Gp]

    iw = jnp.maximum(jnp.minimum(bx1, tx1) - jnp.maximum(bx0, tx0), 0.0)
    ih = jnp.maximum(jnp.minimum(by1, ty1) - jnp.maximum(by0, ty0), 0.0)
    inter = iw * ih
    union = area_b + area_t - inter
    iou = inter * pl.reciprocal(union, approx=True)

    cw = jnp.maximum(bx1, tx1) - jnp.minimum(bx0, tx0)
    ch = jnp.maximum(by1, ty1) - jnp.minimum(by0, ty0)
    area_c = cw * ch
    giou = iou - (area_c - union) * pl.reciprocal(area_c, approx=True)

    out_ref[0] = (w_bbox * cost_bbox + w_class * cost_class
                  + w_giou * (-giou)).astype(out_ref.dtype)


# ----------------------------------------------------------------------------
# Wrapper: batched, per-image, lane-dense cost matrices
# ----------------------------------------------------------------------------
@functools.partial(
    jax.jit,
    static_argnames=("use_focal", "alpha", "gamma",
                     "w_class", "w_bbox", "w_giou", "tile_n"))
def compute_cost_matrices(logits, boxes, onehot_t, tbox_prep, *,
                          use_focal, alpha, gamma,
                          w_class, w_bbox, w_giou, tile_n=512):
    """logits: [B, N, C], boxes: [B, N, 4] cxcywh,
    onehot_t: [B, C, G_pad] (transposed one-hot, zero-padded columns),
    tbox_prep: [B, 8, G_pad] (cx,cy,w,h,x0,y0,x1,y1, dummy-padded columns).
    Returns [B, N, G_pad] float32 cost matrices."""
    B, N, C = logits.shape
    Gp = onehot_t.shape[-1]

    # Query-tile selection: multiple of 8, at most tile_n, minimal padding.
    steps = max(1, -(-N // tile_n))
    tile = _round_up(-(-N // steps), 8)
    Np = steps * tile
    pad = Np - N

    logits = logits.astype(jnp.float32)
    boxes = boxes.astype(jnp.float32)
    if pad:
        logits = jnp.pad(logits, ((0, 0), (0, pad), (0, 0)))
        # valid dummy boxes for padded query rows (sliced off below)
        boxes = jnp.pad(boxes, ((0, 0), (0, pad), (0, 0)), constant_values=0.25)

    kernel = functools.partial(
        _cost_kernel, use_focal=bool(use_focal), alpha=float(alpha),
        gamma=float(gamma), w_class=float(w_class), w_bbox=float(w_bbox),
        w_giou=float(w_giou))

    out = pl.pallas_call(
        kernel,
        out_shape=jax.ShapeDtypeStruct((B, Np, Gp), jnp.float32),
        grid=(B, steps),
        in_specs=[
            pl.BlockSpec((1, tile, C), lambda b, i: (b, i, 0)),  # logits tile
            pl.BlockSpec((1, tile, 4), lambda b, i: (b, i, 0)),  # pred boxes tile
            pl.BlockSpec((1, C, Gp), lambda b, i: (b, 0, 0)),    # one-hot (resident per image)
            pl.BlockSpec((1, 8, Gp), lambda b, i: (b, 0, 0)),    # target boxes (resident per image)
        ],
        out_specs=pl.BlockSpec((1, tile, Gp), lambda b, i: (b, i, 0)),
        compiler_params=pltpu.CompilerParams(
            dimension_semantics=("parallel", "parallel")),
    )(logits, boxes, onehot_t.astype(jnp.float32),
      tbox_prep.astype(jnp.float32))
    return out[:, :N, :]


def _prepare_targets(labels_list, boxes_list, num_classes, g_bucket=128):
    """Pack per-image targets into fixed-size, lane-dense resident tensors:
    one-hot [B, C, G_pad] and prepared boxes [B, 8, G_pad] (cx,cy,w,h,x0,y0,x1,y1).
    Padded columns use all-zero one-hot and valid dummy boxes (0.25).
    Entirely host-side numpy; one device transfer per tensor."""
    labels_np = [np.asarray(l).astype(np.int64).reshape(-1) for l in labels_list]
    boxes_np = [np.asarray(b).astype(np.float32).reshape(-1, 4) for b in boxes_list]
    B = len(labels_np)
    max_g = max([l.shape[0] for l in labels_np] + [1])
    Gp = max(g_bucket, _round_up(max_g, g_bucket))   # fixed 128-multiple bucket

    onehot = np.zeros((B, num_classes, Gp), np.float32)
    prep = np.empty((B, 8, Gp), np.float32)
    for i, (ids, bxs) in enumerate(zip(labels_np, boxes_np)):
        g = ids.shape[0]
        if g:
            onehot[i, ids, np.arange(g)] = 1.0
        bx = np.full((Gp, 4), 0.25, np.float32)
        bx[:g] = bxs
        cx, cy, w, h = bx[:, 0], bx[:, 1], bx[:, 2], bx[:, 3]
        prep[i] = np.stack([cx, cy, w, h,
                            cx - 0.5 * w, cy - 0.5 * h,
                            cx + 0.5 * w, cy + 0.5 * h], axis=0)
    return jnp.asarray(onehot), jnp.asarray(prep), Gp


# ----------------------------------------------------------------------------
# Host-side assignment (Hungarian)
# ----------------------------------------------------------------------------
# TODO(synk): linear_sum_assignment (Hungarian algorithm) has no Pallas
# equivalent; it runs on host (scipy), with a greedy fallback if scipy missing.
def _assign(cost_np):
    if cost_np.shape[1] == 0:
        return np.zeros((0,), np.int64), np.zeros((0,), np.int64)
    if _lsa is not None:
        r, c = _lsa(cost_np)
        return np.asarray(r, np.int64), np.asarray(c, np.int64)
    cost = np.array(cost_np, dtype=np.float64, copy=True)
    n_rows, n_cols = cost.shape
    rows, cols = [], []
    for _ in range(min(n_rows, n_cols)):
        idx = int(np.argmin(cost))
        r, c = divmod(idx, n_cols)
        rows.append(r); cols.append(c)
        cost[r, :] = np.inf
        cost[:, c] = np.inf
    order = np.argsort(rows)
    return np.asarray(rows, np.int64)[order], np.asarray(cols, np.int64)[order]


# ----------------------------------------------------------------------------
# DRMatcher (JAX / Pallas)
# ----------------------------------------------------------------------------
class DRMatcherPallas:
    def __init__(self, weight_dict, use_focal_loss=False, alpha=0.25, gamma=2.0):
        self.cost_class = float(weight_dict['cost_class'])
        self.cost_bbox = float(weight_dict['cost_bbox'])
        self.cost_giou = float(weight_dict['cost_giou'])
        self.use_focal_loss = bool(use_focal_loss)
        self.alpha = float(alpha)
        self.gamma = float(gamma)
        assert self.cost_class != 0 or self.cost_bbox != 0 or self.cost_giou != 0, \
            'all costs cant be 0'

    def forward(self, outputs, targets, use_o2m):
        bs, num_queries, num_class = outputs['pred_logits_o2o'].shape
        sizes = [int(np.asarray(v['boxes']).shape[0]) for v in targets]

        onehot_t, tbox_prep, _ = _prepare_targets(
            [v['labels'] for v in targets], [v['boxes'] for v in targets],
            num_class)

        # ---- dispatch both cost-matrix kernels BEFORE any host sync ----
        C_o2o = compute_cost_matrices(
            outputs['pred_logits_o2o'], outputs['pred_boxes_o2o'],
            onehot_t, tbox_prep,
            use_focal=self.use_focal_loss, alpha=self.alpha, gamma=self.gamma,
            w_class=self.cost_class, w_bbox=self.cost_bbox,
            w_giou=self.cost_giou)

        C_o2m = None
        if use_o2m:
            # The o2m branch in the reference always uses the focal form.
            C_o2m = compute_cost_matrices(
                outputs['pred_logits_o2m'], outputs['pred_boxes_o2m'],
                onehot_t, tbox_prep,
                use_focal=True, alpha=self.alpha, gamma=self.gamma,
                w_class=self.cost_class, w_bbox=self.cost_bbox,
                w_giou=self.cost_giou)

        # ---- host-side Hungarian assignment ----
        C_o2o_np = np.asarray(jax.block_until_ready(C_o2o))
        indices_o2o = [_assign(C_o2o_np[i, :, :sz]) for i, sz in enumerate(sizes)]

        if not use_o2m:
            return indices_o2o, None

        C_o2m_np = np.asarray(jax.block_until_ready(C_o2m))
        indices_o2m = [_assign(C_o2m_np[i, :, :sz]) for i, sz in enumerate(sizes)]
        return indices_o2o, indices_o2m


# ----------------------------------------------------------------------------
# Pure-numpy reference (for correctness check of the cost matrix)
# ----------------------------------------------------------------------------
def _ref_cost_np(logits, boxes, tgt_ids, tgt_boxes, use_focal, alpha, gamma,
                 wc, wb, wg):
    logits = np.asarray(logits, np.float64)
    boxes = np.asarray(boxes, np.float64)
    tgt_ids = np.asarray(tgt_ids)
    tgt_boxes = np.asarray(tgt_boxes, np.float64)
    if use_focal:
        prob = 1.0 / (1.0 + np.exp(-logits))
        p = prob[:, tgt_ids]
        neg = (1 - alpha) * p ** gamma * -np.log(1 - p + 1e-8)
        pos = alpha * (1 - p) ** gamma * -np.log(p + 1e-8)
        cost_class = pos - neg
    else:
        e = np.exp(logits - logits.max(-1, keepdims=True))
        prob = e / e.sum(-1, keepdims=True)
        cost_class = -prob[:, tgt_ids]
    cost_bbox = np.abs(boxes[:, None, :] - tgt_boxes[None, :, :]).sum(-1)

    def to_xyxy(b):
        cx, cy, w, h = b[..., 0], b[..., 1], b[..., 2], b[..., 3]
        return np.stack([cx - w / 2, cy - h / 2, cx + w / 2, cy + h / 2], -1)

    A = to_xyxy(boxes)[:, None, :]
    B = to_xyxy(tgt_boxes)[None, :, :]
    area_a = (A[..., 2] - A[..., 0]) * (A[..., 3] - A[..., 1])
    area_b = (B[..., 2] - B[..., 0]) * (B[..., 3] - B[..., 1])
    iw = np.clip(np.minimum(A[..., 2], B[..., 2]) - np.maximum(A[..., 0], B[..., 0]), 0, None)
    ih = np.clip(np.minimum(A[..., 3], B[..., 3]) - np.maximum(A[..., 1], B[..., 1]), 0, None)
    inter = iw * ih
    union = area_a + area_b - inter
    iou = inter / union
    cw = np.maximum(A[..., 2], B[..., 2]) - np.minimum(A[..., 0], B[..., 0])
    ch = np.maximum(A[..., 3], B[..., 3]) - np.minimum(A[..., 1], B[..., 1])
    area_c = cw * ch
    giou = iou - (area_c - union) / area_c
    return wb * cost_bbox + wc * cost_class + wg * (-giou)


# ----------------------------------------------------------------------------
# Demo
# ----------------------------------------------------------------------------
def _make_boxes(key, lead_shape):
    k1, k2 = jax.random.split(key)
    cxcy = jax.random.uniform(k1, lead_shape + (2,), minval=0.2, maxval=0.8)
    wh = jax.random.uniform(k2, lead_shape + (2,), minval=0.05, maxval=0.3)
    return jnp.concatenate([cxcy, wh], axis=-1).astype(jnp.float32)


if __name__ == "__main__":
    key = jax.random.PRNGKey(0)
    keys = jax.random.split(key, 8)

    bs, nq, nq_o2m, nc = 2, 64, 64, 16
    outputs = {
        'pred_logits_o2o': jax.random.normal(keys[0], (bs, nq, nc), jnp.float32),
        'pred_boxes_o2o': _make_boxes(keys[1], (bs, nq)),
        'pred_logits_o2m': jax.random.normal(keys[2], (bs, nq_o2m, nc), jnp.float32),
        'pred_boxes_o2m': _make_boxes(keys[3], (bs, nq_o2m)),
    }
    sizes = [3, 5]
    targets = []
    for i, s in enumerate(sizes):
        targets.append({
            'labels': jax.random.randint(keys[4 + i], (s,), 0, nc),
            'boxes': _make_boxes(keys[6 + i], (s,)),
        })

    w = {'cost_class': 2.0, 'cost_bbox': 5.0, 'cost_giou': 2.0}
    matcher = DRMatcherPallas(w, use_focal_loss=True, alpha=0.25, gamma=2.0)

    # ---- correctness: compare the Pallas cost matrix against numpy reference ----
    onehot_t, tbox_prep, _ = _prepare_targets(
        [t['labels'] for t in targets], [t['boxes'] for t in targets], nc)

    # focal (sigmoid) branch
    C = compute_cost_matrices(
        outputs['pred_logits_o2o'], outputs['pred_boxes_o2o'], onehot_t, tbox_prep,
        use_focal=True, alpha=0.25, gamma=2.0,
        w_class=w['cost_class'], w_bbox=w['cost_bbox'], w_giou=w['cost_giou'])
    C = np.asarray(jax.block_until_ready(C))
    # softmax branch
    Cs = compute_cost_matrices(
        outputs['pred_logits_o2o'], outputs['pred_boxes_o2o'], onehot_t, tbox_prep,
        use_focal=False, alpha=0.25, gamma=2.0,
        w_class=w['cost_class'], w_bbox=w['cost_bbox'], w_giou=w['cost_giou'])
    Cs = np.asarray(jax.block_until_ready(Cs))
    for i, sz in enumerate(sizes):
        ref = _ref_cost_np(outputs['pred_logits_o2o'][i], outputs['pred_boxes_o2o'][i],
                           targets[i]['labels'], targets[i]['boxes'],
                           True, 0.25, 2.0,
                           w['cost_class'], w['cost_bbox'], w['cost_giou'])
        np.testing.assert_allclose(C[i, :, :sz], ref, rtol=2e-2, atol=2e-2)
        ref_s = _ref_cost_np(outputs['pred_logits_o2o'][i], outputs['pred_boxes_o2o'][i],
                             targets[i]['labels'], targets[i]['boxes'],
                             False, 0.25, 2.0,
                             w['cost_class'], w['cost_bbox'], w['cost_giou'])
        np.testing.assert_allclose(Cs[i, :, :sz], ref_s, rtol=2e-2, atol=2e-2)

    # ---- full forward (o2o + o2m matching) ----
    indices_o2o, indices_o2m = matcher.forward(outputs, targets, use_o2m=True)

    # basic sanity: one match per target
    assert all(len(r) == len(c) == sz for (r, c), sz in zip(indices_o2o, sizes))
    assert all(len(r) == len(c) == sz for (r, c), sz in zip(indices_o2m, sizes))

    # o2m=False path
    indices_only, none_o2m = matcher.forward(outputs, targets, use_o2m=False)
    assert none_o2m is None
    assert all(len(r) == len(c) == sz for (r, c), sz in zip(indices_only, sizes))

    print("KERNEL_OK")
</pallas_src>

<mosaic_0001>
module attributes {stable_mosaic.version = 11 : i64} {
  func.func @_cost_kernel(%arg0: i32, %arg1: i32, %arg2: memref<1x64x16xf32, #tpu.memory_space<vmem>>, %arg3: memref<1x64x4xf32, #tpu.memory_space<vmem>>, %arg4: memref<1x16x128xf32, #tpu.memory_space<vmem>>, %arg5: memref<1x8x128xf32, #tpu.memory_space<vmem>>, %arg6: memref<1x64x128xf32, #tpu.memory_space<vmem>>) attributes {dimension_semantics = [#tpu.dimension_semantics<parallel>, #tpu.dimension_semantics<parallel>], iteration_bounds = array<i64: 2, 1>, scalar_prefetch = 0 : i64, scratch_operands = 0 : i64, tpu.core_type = #tpu.core_type<tc>, window_params = [{transform_indices = @transform_0, window_bounds = array<i64: 1, 64, 16>}, {transform_indices = @transform_1, window_bounds = array<i64: 1, 64, 4>}, {transform_indices = @transform_2, window_bounds = array<i64: 1, 16, 128>}, {transform_indices = @transform_3, window_bounds = array<i64: 1, 8, 128>}, {transform_indices = @transform_4, window_bounds = array<i64: 1, 64, 128>}]} {
    %c0 = arith.constant 0 : index
    %c0_0 = arith.constant 0 : index
    %c0_1 = arith.constant 0 : index
    %0 = vector.load %arg2[%c0, %c0_0, %c0_1] : memref<1x64x16xf32, #tpu.memory_space<vmem>>, vector<1x64x16xf32>
    %1 = vector.shape_cast %0 : vector<1x64x16xf32> to vector<64x16xf32>
    %c0_2 = arith.constant 0 : index
    %c0_3 = arith.constant 0 : index
    %c0_4 = arith.constant 0 : index
    %2 = vector.load %arg4[%c0_2, %c0_3, %c0_4] : memref<1x16x128xf32, #tpu.memory_space<vmem>>, vector<1x16x128xf32>
    %3 = vector.shape_cast %2 : vector<1x16x128xf32> to vector<16x128xf32>
    %cst = arith.constant dense<0.000000e+00> : vector<64x128xf32>
    %4 = tpu.matmul %1, %3, %cst {dimension_numbers = #tpu.dot_dimension_numbers<[1], [0], [0], [1], [0, 0, 1, 1], [], []>} : vector<64x16xf32>, vector<16x128xf32>, vector<64x128xf32> -> vector<64x128xf32>
    %5 = arith.negf %4 : vector<64x128xf32>
    %6 = math.exp %5 : vector<64x128xf32>
    %cst_5 = arith.constant 1.000000e+00 : f32
    %7 = vector.broadcast %cst_5 : f32 to vector<64x128xf32>
    %8 = arith.addf %7, %6 : vector<64x128xf32>
    %9 = arith.divf %7, %8 : vector<64x128xf32>
    %cst_6 = arith.constant 1.000000e+00 : f32
    %10 = vector.broadcast %cst_6 : f32 to vector<64x128xf32>
    %11 = arith.subf %10, %9 : vector<64x128xf32>
    %12 = arith.mulf %9, %9 : vector<64x128xf32>
    %13 = arith.mulf %11, %11 : vector<64x128xf32>
    %cst_7 = arith.constant 7.500000e-01 : f32
    %14 = vector.broadcast %cst_7 : f32 to vector<64x128xf32>
    %15 = arith.mulf %14, %12 : vector<64x128xf32>
    %cst_8 = arith.constant 9.99999993E-9 : f32
    %16 = vector.broadcast %cst_8 : f32 to vector<64x128xf32>
    %17 = arith.addf %11, %16 : vector<64x128xf32>
    %18 = math.log %17 : vector<64x128xf32>
    %cst_9 = arith.constant 0.000000e+00 : f32
    %19 = vector.broadcast %cst_9 : f32 to vector<64x128xf32>
    %20 = arith.subf %19, %18 : vector<64x128xf32>
    %21 = arith.mulf %15, %20 : vector<64x128xf32>
    %cst_10 = arith.constant 2.500000e-01 : f32
    %22 = vector.broadcast %cst_10 : f32 to vector<64x128xf32>
    %23 = arith.mulf %22, %13 : vector<64x128xf32>
    %cst_11 = arith.constant 9.99999993E-9 : f32
    %24 = vector.broadcast %cst_11 : f32 to vector<64x128xf32>
    %25 = arith.addf %9, %24 : vector<64x128xf32>
    %26 = math.log %25 : vector<64x128xf32>
    %cst_12 = arith.constant 0.000000e+00 : f32
    %27 = vector.broadcast %cst_12 : f32 to vector<64x128xf32>
    %28 = arith.subf %27, %26 : vector<64x128xf32>
    %29 = arith.mulf %23, %28 : vector<64x128xf32>
    %30 = arith.subf %29, %21 : vector<64x128xf32>
    %c0_13 = arith.constant 0 : index
    %c0_14 = arith.constant 0 : index
    %c0_15 = arith.constant 0 : index
    %31 = vector.load %arg3[%c0_13, %c0_14, %c0_15] : memref<1x64x4xf32, #tpu.memory_space<vmem>>, vector<1x64x4xf32>
    %32 = vector.shape_cast %31 : vector<1x64x4xf32> to vector<64x4xf32>
    %c0_16 = arith.constant 0 : index
    %c0_17 = arith.constant 0 : index
    %c0_18 = arith.constant 0 : index
    %33 = vector.load %arg5[%c0_16, %c0_17, %c0_18] : memref<1x8x128xf32, #tpu.memory_space<vmem>>, vector<1x8x128xf32>
    %34 = vector.shape_cast %33 : vector<1x8x128xf32> to vector<8x128xf32>
    %35 = vector.extract_strided_slice %32 {offsets = [0, 0], sizes = [64, 1], strides = [1, 1]} : vector<64x4xf32> to vector<64x1xf32>
    %36 = vector.extract_strided_slice %32 {offsets = [0, 1], sizes = [64, 1], strides = [1, 1]} : vector<64x4xf32> to vector<64x1xf32>
    %37 = vector.extract_strided_slice %32 {offsets = [0, 2], sizes = [64, 1], strides = [1, 1]} : vector<64x4xf32> to vector<64x1xf32>
    %38 = vector.extract_strided_slice %32 {offsets = [0, 3], sizes = [64, 1], strides = [1, 1]} : vector<64x4xf32> to vector<64x1xf32>
    %39 = vector.extract_strided_slice %34 {offsets = [0, 0], sizes = [1, 128], strides = [1, 1]} : vector<8x128xf32> to vector<1x128xf32>
    %40 = vector.extract_strided_slice %34 {offsets = [1, 0], sizes = [1, 128], strides = [1, 1]} : vector<8x128xf32> to vector<1x128xf32>
    %41 = vector.extract_strided_slice %34 {offsets = [2, 0], sizes = [1, 128], strides = [1, 1]} : vector<8x128xf32> to vector<1x128xf32>
    %42 = vector.extract_strided_slice %34 {offsets = [3, 0], sizes = [1, 128], strides = [1, 1]} : vector<8x128xf32> to vector<1x128xf32>
    %43 = vector.extract_strided_slice %34 {offsets = [4, 0], sizes = [1, 128], strides = [1, 1]} : vector<8x128xf32> to vector<1x128xf32>
    %44 = vector.extract_strided_slice %34 {offsets = [5, 0], sizes = [1, 128], strides = [1, 1]} : vector<8x128xf32> to vector<1x128xf32>
    %45 = vector.extract_strided_slice %34 {offsets = [6, 0], sizes = [1, 128], strides = [1, 1]} : vector<8x128xf32> to vector<1x128xf32>
    %46 = vector.extract_strided_slice %34 {offsets = [7, 0], sizes = [1, 128], strides = [1, 1]} : vector<8x128xf32> to vector<1x128xf32>
    %47 = vector.broadcast %35 : vector<64x1xf32> to vector<64x128xf32>
    %48 = vector.broadcast %39 : vector<1x128xf32> to vector<64x128xf32>
    %49 = arith.subf %47, %48 : vector<64x128xf32>
    %50 = math.absf %49 : vector<64x128xf32>
    %51 = vector.broadcast %36 : vector<64x1xf32> to vector<64x128xf32>
    %52 = vector.broadcast %40 : vector<1x128xf32> to vector<64x128xf32>
    %53 = arith.subf %51, %52 : vector<64x128xf32>
    %54 = math.absf %53 : vector<64x128xf32>
    %55 = arith.addf %50, %54 : vector<64x128xf32>
    %56 = vector.broadcast %37 : vector<64x1xf32> to vector<64x128xf32>
    %57 = vector.broadcast %41 : vector<1x128xf32> to vector<64x128xf32>
    %58 = arith.subf %56, %57 : vector<64x128xf32>
    %59 = math.absf %58 : vector<64x128xf32>
    %60 = arith.addf %55, %59 : vector<64x128xf32>
    %61 = vector.broadcast %38 : vector<64x1xf32> to vector<64x128xf32>
    %62 = vector.broadcast %42 : vector<1x128xf32> to vector<64x128xf32>
    %63 = arith.subf %61, %62 : vector<64x128xf32>
    %64 = math.absf %63 : vector<64x128xf32>
    %65 = arith.addf %60, %64 : vector<64x128xf32>
    %cst_19 = arith.constant 5.000000e-01 : f32
    %66 = vector.broadcast %cst_19 : f32 to vector<64x1xf32>
    %67 = arith.mulf %66, %37 : vector<64x1xf32>
    %68 = arith.subf %35, %67 : vector<64x1xf32>
    %cst_20 = arith.constant 5.000000e-01 : f32
    %69 = vector.broadcast %cst_20 : f32 to vector<64x1xf32>
    %70 = arith.mulf %69, %38 : vector<64x1xf32>
    %71 = arith.subf %36, %70 : vector<64x1xf32>
    %cst_21 = arith.constant 5.000000e-01 : f32
    %72 = vector.broadcast %cst_21 : f32 to vector<64x1xf32>
    %73 = arith.mulf %72, %37 : vector<64x1xf32>
    %74 = arith.addf %35, %73 : vector<64x1xf32>
    %cst_22 = arith.constant 5.000000e-01 : f32
    %75 = vector.broadcast %cst_22 : f32 to vector<64x1xf32>
    %76 = arith.mulf %75, %38 : vector<64x1xf32>
    %77 = arith.addf %36, %76 : vector<64x1xf32>
    %78 = arith.subf %74, %68 : vector<64x1xf32>
    %79 = arith.subf %77, %71 : vector<64x1xf32>
    %80 = arith.mulf %78, %79 : vector<64x1xf32>
    %81 = arith.subf %45, %43 : vector<1x128xf32>
    %82 = arith.subf %46, %44 : vector<1x128xf32>
    %83 = arith.mulf %81, %82 : vector<1x128xf32>
    %84 = vector.broadcast %74 : vector<64x1xf32> to vector<64x128xf32>
    %85 = vector.broadcast %45 : vector<1x128xf32> to vector<64x128xf32>
    %86 = arith.minimumf %84, %85 : vector<64x128xf32>
    %87 = vector.broadcast %68 : vector<64x1xf32> to vector<64x128xf32>
    %88 = vector.broadcast %43 : vector<1x128xf32> to vector<64x128xf32>
    %89 = arith.maximumf %87, %88 : vector<64x128xf32>
    %90 = arith.subf %86, %89 : vector<64x128xf32>
    %cst_23 = arith.constant 0.000000e+00 : f32
    %91 = vector.broadcast %cst_23 : f32 to vector<64x128xf32>
    %92 = arith.maximumf %90, %91 : vector<64x128xf32>
    %93 = vector.broadcast %77 : vector<64x1xf32> to vector<64x128xf32>
    %94 = vector.broadcast %46 : vector<1x128xf32> to vector<64x128xf32>
    %95 = arith.minimumf %93, %94 : vector<64x128xf32>
    %96 = vector.broadcast %71 : vector<64x1xf32> to vector<64x128xf32>
    %97 = vector.broadcast %44 : vector<1x128xf32> to vector<64x128xf32>
    %98 = arith.maximumf %96, %97 : vector<64x128xf32>
    %99 = arith.subf %95, %98 : vector<64x128xf32>
    %cst_24 = arith.constant 0.000000e+00 : f32
    %100 = vector.broadcast %cst_24 : f32 to vector<64x128xf32>
    %101 = arith.maximumf %99, %100 : vector<64x128xf32>
    %102 = arith.mulf %92, %101 : vector<64x128xf32>
    %103 = vector.broadcast %80 : vector<64x1xf32> to vector<64x128xf32>
    %104 = vector.broadcast %83 : vector<1x128xf32> to vector<64x128xf32>
    %105 = arith.addf %103, %104 : vector<64x128xf32>
    %106 = arith.subf %105, %102 : vector<64x128xf32>
    %107 = tpu.reciprocal %106 {approx = true} : vector<64x128xf32> -> vector<64x128xf32>
    %108 = arith.mulf %102, %107 : vector<64x128xf32>
    %109 = vector.broadcast %74 : vector<64x1xf32> to vector<64x128xf32>
    %110 = vector.broadcast %45 : vector<1x128xf32> to vector<64x128xf32>
    %111 = arith.maximumf %109, %110 : vector<64x128xf32>
    %112 = vector.broadcast %68 : vector<64x1xf32> to vector<64x128xf32>
    %113 = vector.broadcast %43 : vector<1x128xf32> to vector<64x128xf32>
    %114 = arith.minimumf %112, %113 : vector<64x128xf32>
    %115 = arith.subf %111, %114 : vector<64x128xf32>
    %116 = vector.broadcast %77 : vector<64x1xf32> to vector<64x128xf32>
    %117 = vector.broadcast %46 : vector<1x128xf32> to vector<64x128xf32>
    %118 = arith.maximumf %116, %117 : vector<64x128xf32>
    %119 = vector.broadcast %71 : vector<64x1xf32> to vector<64x128xf32>
    %120 = vector.broadcast %44 : vector<1x128xf32> to vector<64x128xf32>
    %121 = arith.minimumf %119, %120 : vector<64x128xf32>
    %122 = arith.subf %118, %121 : vector<64x128xf32>
    %123 = arith.mulf %115, %122 : vector<64x128xf32>
    %124 = arith.subf %123, %106 : vector<64x128xf32>
    %125 = tpu.reciprocal %123 {approx = true} : vector<64x128xf32> -> vector<64x128xf32>
    %126 = arith.mulf %124, %125 : vector<64x128xf32>
    %127 = arith.subf %108, %126 : vector<64x128xf32>
    %cst_25 = arith.constant 5.000000e+00 : f32
    %128 = vector.broadcast %cst_25 : f32 to vector<64x128xf32>
    %129 = arith.mulf %128, %65 : vector<64x128xf32>
    %cst_26 = arith.constant 2.000000e+00 : f32
    %130 = vector.broadcast %cst_26 : f32 to vector<64x128xf32>
    %131 = arith.mulf %130, %30 : vector<64x128xf32>
    %132 = arith.addf %129, %131 : vector<64x128xf32>
    %cst_27 = arith.constant 0.000000e+00 : f32
    %133 = vector.broadcast %cst_27 : f32 to vector<64x128xf32>
    %134 = arith.subf %133, %127 : vector<64x128xf32>
    %cst_28 = arith.constant 2.000000e+00 : f32
    %135 = vector.broadcast %cst_28 : f32 to vector<64x128xf32>
    %136 = arith.mulf %135, %134 : vector<64x128xf32>
    %137 = arith.addf %132, %136 : vector<64x128xf32>
    %c0_29 = arith.constant 0 : index
    %c0_30 = arith.constant 0 : index
    %c0_31 = arith.constant 0 : index
    %138 = vector.load %arg6[%c0_29, %c0_30, %c0_31] : memref<1x64x128xf32, #tpu.memory_space<vmem>>, vector<1x64x128xf32>
    %139 = vector.shape_cast %138 : vector<1x64x128xf32> to vector<64x128xf32>
    %140 = vector.shape_cast %137 : vector<64x128xf32> to vector<1x64x128xf32>
    tpu.vector_store %arg6[%c0_29, %c0_30, %c0_31], %140 {strides = array<i32>} : memref<1x64x128xf32, #tpu.memory_space<vmem>>, vector<1x64x128xf32>,
    return
  }
  func.func @transform_0(%arg0: i32, %arg1: i32) -> (i32, i32, i32) {
    %c0_i32 = arith.constant 0 : i32
    %c0_i32_0 = arith.constant 0 : i32
    return %arg0, %arg1, %c0_i32 : i32, i32, i32
  }
  func.func @transform_1(%arg0: i32, %arg1: i32) -> (i32, i32, i32) {
    %c0_i32 = arith.constant 0 : i32
    %c0_i32_0 = arith.constant 0 : i32
    return %arg0, %arg1, %c0_i32 : i32, i32, i32
  }
  func.func @transform_2(%arg0: i32, %arg1: i32) -> (i32, i32, i32) {
    %c0_i32 = arith.constant 0 : i32
    %c0_i32_0 = arith.constant 0 : i32
    %c0_i32_1 = arith.constant 0 : i32
    return %arg0, %c0_i32, %c0_i32_0 : i32, i32, i32
  }
  func.func @transform_3(%arg0: i32, %arg1: i32) -> (i32, i32, i32) {
    %c0_i32 = arith.constant 0 : i32
    %c0_i32_0 = arith.constant 0 : i32
    %c0_i32_1 = arith.constant 0 : i32
    return %arg0, %c0_i32, %c0_i32_0 : i32, i32, i32
  }
  func.func @transform_4(%arg0: i32, %arg1: i32) -> (i32, i32, i32) {
    %c0_i32 = arith.constant 0 : i32
    %c0_i32_0 = arith.constant 0 : i32
    return %arg0, %arg1, %c0_i32 : i32, i32, i32
  }
}

</mosaic_0001>

<llo_original>
// kernel: compute_cost_matrices.1
$region0: #{compute_cost_matrices.1}
  #allocation0 [shape = 'u32[]', space=smem, size = 0x4, offset = 0x4, fixed_abs, tag = 'smem constant byte address 0x4 - core index']
  #allocation1 [shape = 'u32[144,128]{1,0:T(1,128)}', space=vmem, size = 0x12000, scoped, tag = 'internal scratch']
  %s0 = inlined_call_operand.vmem [shape: f32[2,64,16], index: 0, kind: input, shape index: {}]
  %s1 = inlined_call_operand.vmem [shape: f32[2,64,4], index: 1, kind: input, shape index: {}]
  %s2 = inlined_call_operand.vmem [shape: f32[2,16,128], index: 2, kind: input, shape index: {}]
  %s3 = inlined_call_operand.vmem [shape: f32[2,8,128], index: 3, kind: input, shape index: {}]
  %s4 = inlined_call_operand.hbm [shape: f32[2,64,128], index: 4, kind: output, shape index: {}]
  %s5 = sld [smem:[#allocation0]]
  $region49: #{compute_cost_matrices.1} parent=0
    _
  %s7 = ssub.s32 1, %s5
  %s8 = scalar_select 0, %s7, %s5
  $region1: #{compute_cost_matrices.1} parent=0
    #allocation2 [shape = 'u8[65536]{0}', space=vmem, size = 0x10000, scoped, tag = 'output window, operand 0']
    #allocation3 [shape = 's32[2]{0}', space=sflag, size = 0x8, scoped, tag = 'scoped memory for compute_cost_matrices.1']
    %9 = vsyncpa [#allocation3], 0
    %s10 = scalar_lea.sflag [#allocation3], 1
    %11 = vsyncpa %s10, 0
    loop: start=0, step=1, limit=4
    $region2: #{compute_cost_matrices.1} parent=1 // loop_pre_header
      _
    $region3: #{compute_cost_matrices.1} parent=1 // loop_header
      %s13 = sphi 0, %s17
      %p14 = scmp.ge.s32.totalorder %s13, 4
      %s20 = sphi 0, %s32
      %s21 = sphi 0, %s28
      %s22 = sphi 0, %s20
      %s23 = sphi 0, %s21
      %s24 = sphi 0, %s22
      %s25 = sphi 0, %s23
      %s37 = sphi 0, %s39
      %s40 = sphi 0, %s37
      %s41 = sphi 0, %s40
      %s57 = sphi 0, %s41
      %s65 = sphi 0, %s67
      %s68 = sphi 0, %s65
      %s69 = sphi 0, %s68
      %s85 = sphi 0, %s69
      %s91 = sphi 0, %s93
      %s94 = sphi 0, %s91
      %s95 = sphi 0, %s94
      %s111 = sphi 0, %s95
      %s117 = sphi 0, %s119
      %s120 = sphi 0, %s117
      %s121 = sphi 0, %s120
      %s137 = sphi 0, %s121
      %s145 = sphi 0, %s147
      %s148 = sphi 0, %s145
      %s149 = sphi 0, %s148
      %s165 = sphi 0, %s149
    $region4: #{compute_cost_matrices.1} parent=1 // loop_header_branch
      %16 = sbr.rel (%p14) target = $region8
    $region5: #{compute_cost_matrices.1} parent=1 // loop_body
      %s18 = ssub.s32 %s13, 1
      %s19 = ssub.s32 %s13, 2
      %s26 = sadd.s32 1, %s21
      %p27 = scmp.ge.s32.totalorder %s26, 1
      %s28 = scalar_select %p27, 0, %s26
      %s29 = sadd.s32 1, %s20
      %s30 = scalar_select %p27, %s29, %s20
      %p31 = scmp.ge.s32.totalorder %s30, 2
      %s32 = scalar_select %p31, 0, %s30
      %s33 = ssub.s32 %s20, %s32
      %s34 = ssub.s32 %s21, %s28
      %s35 = sor.u32 %s33, %s34
      %p36 = scmp.eq.s32.totalorder %s35, 0
      %s38 = sadd.s32 %s37, 1
      %s39 = scalar_select %p36, %s37, %s38
      %p42 = pneg %p36
      %p43 = scmp.eq.s32.totalorder %s13, 1
      %p44 = por %p42, %p43
      %p45 = scmp.ne.s32.totalorder %s37, %s40
      %p46 = scmp.eq.s32.totalorder %s13, 0
      %p47 = por %p45, %p46
      %p48 = scmp.ne.s32.totalorder %s37, %s40
      %p49 = scmp.eq.s32.totalorder %s18, 1
      %p50 = por %p48, %p49
      %p51 = scmp.ne.s32.totalorder %s40, %s41
      %p52 = scmp.eq.s32.totalorder %s18, 0
      %p53 = por %p51, %p52
      %p54 = scmp.ne.s32.totalorder %s40, %s41
      %p55 = scmp.eq.s32.totalorder %s19, 1
      %p56 = por %p54, %p55
      %p58 = scmp.ne.s32.totalorder %s41, %s57
      %p59 = scmp.eq.s32.totalorder %s19, 0
      %p60 = por %p58, %p59
      %s61 = ssub.s32 %s20, %s32
      %s62 = ssub.s32 %s21, %s28
      %s63 = sor.u32 %s61, %s62
      %p64 = scmp.eq.s32.totalorder %s63, 0
      %s66 = sadd.s32 %s65, 1
      %s67 = scalar_select %p64, %s65, %s66
      %p70 = pneg %p64
      %p71 = scmp.eq.s32.totalorder %s13, 1
      %p72 = por %p70, %p71
      %p73 = scmp.ne.s32.totalorder %s65, %s68
      %p74 = scmp.eq.s32.totalorder %s13, 0
      %p75 = por %p73, %p74
      %p76 = scmp.ne.s32.totalorder %s65, %s68
      %p77 = scmp.eq.s32.totalorder %s18, 1
      %p78 = por %p76, %p77
      %p79 = scmp.ne.s32.totalorder %s68, %s69
      %p80 = scmp.eq.s32.totalorder %s18, 0
      %p81 = por %p79, %p80
      %p82 = scmp.ne.s32.totalorder %s68, %s69
      %p83 = scmp.eq.s32.totalorder %s19, 1
      %p84 = por %p82, %p83
      %p86 = scmp.ne.s32.totalorder %s69, %s85
      %p87 = scmp.eq.s32.totalorder %s19, 0
      %p88 = por %p86, %p87
      %s89 = ssub.s32 %s20, %s32
      %p90 = scmp.eq.s32.totalorder %s89, 0
      %s92 = sadd.s32 %s91, 1
      %s93 = scalar_select %p90, %s91, %s92
      %p96 = pneg %p90
      %p97 = scmp.eq.s32.totalorder %s13, 1
      %p98 = por %p96, %p97
      %p99 = scmp.ne.s32.totalorder %s91, %s94
      %p100 = scmp.eq.s32.totalorder %s13, 0
      %p101 = por %p99, %p100
      %p102 = scmp.ne.s32.totalorder %s91, %s94
      %p103 = scmp.eq.s32.totalorder %s18, 1
      %p104 = por %p102, %p103
      %p105 = scmp.ne.s32.totalorder %s94, %s95
      %p106 = scmp.eq.s32.totalorder %s18, 0
      %p107 = por %p105, %p106
      %p108 = scmp.ne.s32.totalorder %s94, %s95
      %p109 = scmp.eq.s32.totalorder %s19, 1
      %p110 = por %p108, %p109
      %p112 = scmp.ne.s32.totalorder %s95, %s111
      %p113 = scmp.eq.s32.totalorder %s19, 0
      %p114 = por %p112, %p113
      %s115 = ssub.s32 %s20, %s32
      %p116 = scmp.eq.s32.totalorder %s115, 0
      %s118 = sadd.s32 %s117, 1
      %s119 = scalar_select %p116, %s117, %s118
      %p122 = pneg %p116
      %p123 = scmp.eq.s32.totalorder %s13, 1
      %p124 = por %p122, %p123
      %p125 = scmp.ne.s32.totalorder %s117, %s120
      %p126 = scmp.eq.s32.totalorder %s13, 0
      %p127 = por %p125, %p126
      %p128 = scmp.ne.s32.totalorder %s117, %s120
      %p129 = scmp.eq.s32.totalorder %s18, 1
      %p130 = por %p128, %p129
      %p131 = scmp.ne.s32.totalorder %s120, %s121
      %p132 = scmp.eq.s32.totalorder %s18, 0
      %p133 = por %p131, %p132
      %p134 = scmp.ne.s32.totalorder %s120, %s121
      %p135 = scmp.eq.s32.totalorder %s19, 1
      %p136 = por %p134, %p135
      %p138 = scmp.ne.s32.totalorder %s121, %s137
      %p139 = scmp.eq.s32.totalorder %s19, 0
      %p140 = por %p138, %p139
      %s141 = ssub.s32 %s20, %s32
      %s142 = ssub.s32 %s21, %s28
      %s143 = sor.u32 %s141, %s142
      %p144 = scmp.eq.s32.totalorder %s143, 0
      %s146 = sadd.s32 %s145, 1
      %s147 = scalar_select %p144, %s145, %s146
      %p150 = pneg %p144
      %p151 = scmp.eq.s32.totalorder %s13, 1
      %p152 = por %p150, %p151
      %p153 = scmp.ne.s32.totalorder %s145, %s148
      %p154 = scmp.eq.s32.totalorder %s13, 0
      %p155 = por %p153, %p154
      %p156 = scmp.ne.s32.totalorder %s145, %s148
      %p157 = scmp.eq.s32.totalorder %s18, 1
      %p158 = por %p156, %p157
      %p159 = scmp.ne.s32.totalorder %s148, %s149
      %p160 = scmp.eq.s32.totalorder %s18, 0
      %p161 = por %p159, %p160
      %p162 = scmp.ne.s32.totalorder %s148, %s149
      %p163 = scmp.eq.s32.totalorder %s19, 1
      %p164 = por %p162, %p163
      %p166 = scmp.ne.s32.totalorder %s149, %s165
      %p167 = scmp.eq.s32.totalorder %s19, 0
      %p168 = por %p166, %p167
      %p169 = scmp.le.s32.totalorder 1, %s13
      %p170 = scmp.lt.s32.totalorder %s13, 3
      %p171 = pnand %p169, %p170
      %p172 = pneg %p171
      // Predicated region
      $region9: #{compute_cost_matrices.1} parent=5 // pred_check
        _
      $region10: #{compute_cost_matrices.1} parent=5 // pred_check_branch
        %174 = sbr.rel (%p171) target = $region12
      $region11: #{compute_cost_matrices.1} parent=5 // pred_region
        %s175 = ssub.s32 %s13, 1
      $region12: #{compute_cost_matrices.1} parent=5 // pred_fallthru
        _
      %p176 = scmp.lt.s32.totalorder %s13, 2
      // Predicated region
      $region13: #{compute_cost_matrices.1} parent=5 // pred_check
        %p177 = pneg %p176
      $region14: #{compute_cost_matrices.1} parent=5 // pred_check_branch
        %179 = sbr.rel (%p177) target = $region16
      $region15: #{compute_cost_matrices.1} parent=5 // pred_region
        // Predicated region
        $region17: #{compute_cost_matrices.1} parent=15 // pred_check
          %p180 = pneg %p47
        $region18: #{compute_cost_matrices.1} parent=15 // pred_check_branch
          %182 = sbr.rel (%p180) target = $region20
        $region19: #{compute_cost_matrices.1} parent=15 // pred_region
          %s183 = smul.u32 8, %s21
          %p184 = scmp.lt.s32.totalorder %s20, 1
          %s185 = scalar_select %p184, %s20, 1
          %p186 = scmp.lt.s32.totalorder %s183, 7
          %s187 = scalar_select %p186, %s183, 7
          %s188 = smul.addr %s185, 8
          %s189 = sadd.s32 %s187, %s188
          %s190 = smul.addr %s189, 8
          %s191 = scalar_lea.vmem %s0, %s190
          %s192 = smul.u32 8, %s21
        $region20: #{compute_cost_matrices.1} parent=15 // pred_fallthru
          _
        // Predicated region
        $region21: #{compute_cost_matrices.1} parent=15 // pred_check
          %p193 = pneg %p75
        $region22: #{compute_cost_matrices.1} parent=15 // pred_check_branch
          %195 = sbr.rel (%p193) target = $region24
        $region23: #{compute_cost_matrices.1} parent=15 // pred_region
          %s196 = smul.u32 8, %s21
          %p197 = scmp.lt.s32.totalorder %s20, 1
          %s198 = scalar_select %p197, %s20, 1
          %p199 = scmp.lt.s32.totalorder %s196, 7
          %s200 = scalar_select %p199, %s196, 7
          %s201 = smul.addr %s198, 8
          %s202 = sadd.s32 %s200, %s201
          %s203 = smul.addr %s202, 8
          %s204 = scalar_lea.vmem %s1, %s203
          %s205 = smul.u32 8, %s21
        $region24: #{compute_cost_matrices.1} parent=15 // pred_fallthru
          _
        // Predicated region
        $region25: #{compute_cost_matrices.1} parent=15 // pred_check
          %p206 = pneg %p101
        $region26: #{compute_cost_matrices.1} parent=15 // pred_check_branch
          %208 = sbr.rel (%p206) target = $region28
        $region27: #{compute_cost_matrices.1} parent=15 // pred_region
          %p209 = scmp.lt.s32.totalorder %s20, 1
          %s210 = scalar_select %p209, %s20, 1
          %s211 = smul.addr %s210, 2
          %s212 = smul.addr %s211, 8
          %s213 = scalar_lea.vmem %s2, %s212
        $region28: #{compute_cost_matrices.1} parent=15 // pred_fallthru
          _
        // Predicated region
        $region29: #{compute_cost_matrices.1} parent=15 // pred_check
          %p214 = pneg %p127
        $region30: #{compute_cost_matrices.1} parent=15 // pred_check_branch
          %216 = sbr.rel (%p214) target = $region32
        $region31: #{compute_cost_matrices.1} parent=15 // pred_region
          %p217 = scmp.lt.s32.totalorder %s20, 1
          %s218 = scalar_select %p217, %s20, 1
          %s219 = smul.addr %s218, 8
          %s220 = scalar_lea.vmem %s3, %s219
        $region32: #{compute_cost_matrices.1} parent=15 // pred_fallthru
          _
      $region16: #{compute_cost_matrices.1} parent=5 // pred_fallthru
        _
      %p221 = scmp.le.s32.totalorder 1, %s13
      %p222 = scmp.lt.s32.totalorder %s13, 3
      %p223 = pnand %p221, %p222
      %p224 = pneg %p223
      // Predicated region
      $region33: #{compute_cost_matrices.1} parent=5 // pred_check
        _
      $region34: #{compute_cost_matrices.1} parent=5 // pred_check_branch
        %226 = sbr.rel (%p223) target = $region36
      $region35: #{compute_cost_matrices.1} parent=5 // pred_region
        %s227 = ssub.s32 %s13, 1
        %s228 = smul.u32 8, %s23
        %p229 = scmp.lt.s32.totalorder %s22, 1
        %s230 = scalar_select %p229, %s22, 1
        %p231 = scmp.lt.s32.totalorder %s228, 7
        %s232 = scalar_select %p231, %s228, 7
        %s233 = smul.addr %s230, 8
        %s234 = sadd.s32 %s232, %s233
        %s235 = smul.addr %s234, 8
        %s236 = scalar_lea.vmem %s0, %s235
        %p237 = pneg %p53
        %p238 = pneg %p50
        %s239 = smul.u32 8, %s23
        %p240 = scmp.lt.s32.totalorder %s22, 1
        %s241 = scalar_select %p240, %s22, 1
        %p242 = scmp.lt.s32.totalorder %s239, 7
        %s243 = scalar_select %p242, %s239, 7
        %s244 = smul.addr %s241, 8
        %s245 = sadd.s32 %s243, %s244
        %s246 = smul.addr %s245, 8
        %s247 = scalar_lea.vmem %s1, %s246
        %p248 = pneg %p81
        %p249 = pneg %p78
        %p250 = scmp.lt.s32.totalorder %s22, 1
        %s251 = scalar_select %p250, %s22, 1
        %s252 = smul.addr %s251, 2
        %s253 = smul.addr %s252, 8
        %s254 = scalar_lea.vmem %s2, %s253
        %p255 = pneg %p107
        %p256 = pneg %p104
        %p257 = scmp.lt.s32.totalorder %s22, 1
        %s258 = scalar_select %p257, %s22, 1
        %s259 = smul.addr %s258, 8
        %s260 = scalar_lea.vmem %s3, %s259
        %p261 = pneg %p133
        %p262 = pneg %p130
        %p263 = pneg %p161
        %p264 = pneg %p158
        %s265 = sand.u32 %s148, 1
        %s266 = scalar_lea.sflag [#allocation3], %s265
        %s267 = sand.u32 %s148, 1
        %s268 = smul.addr %s267, 64
        %s269 = scalar_lea.vmem [#allocation2], %s268
        %s270 = smul.u32 8, %s23
        %p271 = scmp.lt.s32.totalorder %s22, 1
        %s272 = scalar_select %p271, %s22, 1
        %p273 = scmp.lt.s32.totalorder %s270, 7
        %s274 = scalar_select %p273, %s270, 7
        %s275 = smul.addr %s272, 8
        %s276 = sadd.s32 %s274, %s275
        %s277 = smul.addr %s276, 8
        %s278 = scalar_lea.vmem %s0, %s277
        %s279 = smul.u32 8, %s23
        %s280 = smul.u32 8, %s23
        %p281 = scmp.lt.s32.totalorder %s22, 1
        %s282 = scalar_select %p281, %s22, 1
        %p283 = scmp.lt.s32.totalorder %s280, 7
        %s284 = scalar_select %p283, %s280, 7
        %s285 = smul.addr %s282, 8
        %s286 = sadd.s32 %s284, %s285
        %s287 = smul.addr %s286, 8
        %s288 = scalar_lea.vmem %s1, %s287
        %s289 = smul.u32 8, %s23
        %p290 = scmp.lt.s32.totalorder %s22, 1
        %s291 = scalar_select %p290, %s22, 1
        %s292 = smul.addr %s291, 2
        %s293 = smul.addr %s292, 8
        %s294 = scalar_lea.vmem %s2, %s293
        %p295 = scmp.lt.s32.totalorder %s22, 1
        %s296 = scalar_select %p295, %s22, 1
        %s297 = smul.addr %s296, 8
        %s298 = scalar_lea.vmem %s3, %s297
        %s299 = smul.u32 8, %s23
        %v300 = vld [vmem:[%s278] sm:$0xff]
        %v301 = vld [vmem:[%s278 + $0x8] sm:$0xff]
        %v302 = vld [vmem:[%s278 + $0x10] sm:$0xff]
        %v303 = vld [vmem:[%s278 + $0x18] sm:$0xff]
        %v304 = vld [vmem:[%s278 + $0x20] sm:$0xff]
        %v305 = vld [vmem:[%s278 + $0x28] sm:$0xff]
        %v306 = vld [vmem:[%s278 + $0x30] sm:$0xff]
        %v307 = vld [vmem:[%s278 + $0x38] sm:$0xff]
        %v308 = vld [vmem:[%s294] sm:$0xff]
        %v309 = vld [vmem:[%s294 + $0x8] sm:$0xff]
        %vm310 = vcmask 130048
        %v312 = vsel %vm310, %v300, 0
        %v315 = vsel %vm310, %v301, 0
        %v318 = vsel %vm310, %v302, 0
        %v321 = vsel %vm310, %v303, 0
        %v324 = vsel %vm310, %v304, 0
        %v327 = vsel %vm310, %v305, 0
        %v330 = vsel %vm310, %v306, 0
        %v333 = vsel %vm310, %v307, 0
        %335 = vmatprep.subr.mxu0 0.0
        %336 = vmatpush1.msra.mxu0 %v308
        %337 = vmatprep.subr.mxu0 0.0
        %338 = vmatpush1.msra.mxu0 %v309
        %339 = vmatprep.subr.mxu0 0.0
        %340 = vmatpush1.msra.mxu0 0.0
        %341 = vmatprep.subr.mxu0 0.0
        %342 = vmatpush1.msra.mxu0 0.0
        %343 = vmatprep.subr.mxu0 0.0
        %344 = vmatpush1.msra.mxu0 0.0
        %345 = vmatprep.subr.mxu0 0.0
        %346 = vmatpush1.msra.mxu0 0.0
        %347 = vmatprep.subr.mxu0 0.0
        %348 = vmatpush1.msra.mxu0 0.0
        %349 = vmatprep.subr.mxu0 0.0
        %350 = vmatpush1.msra.mxu0 0.0
        %351 = vmatprep.subr.mxu0 0.0
        %352 = vmatpush1.msra.mxu0 0.0
        %353 = vmatprep.subr.mxu0 0.0
        %354 = vmatpush1.msra.mxu0 0.0
        %355 = vmatprep.subr.mxu0 0.0
        %356 = vmatpush1.msra.mxu0 0.0
        %357 = vmatprep.subr.mxu0 0.0
        %358 = vmatpush1.msra.mxu0 0.0
        %359 = vmatprep.subr.mxu0 0.0
        %360 = vmatpush1.msra.mxu0 0.0
        %361 = vmatprep.subr.mxu0 0.0
        %362 = vmatpush1.msra.mxu0 0.0
        %363 = vmatprep.subr.mxu0 0.0
        %364 = vmatpush1.msra.mxu0 0.0
        %365 = vmatprep.subr.mxu0 0.0
        %366 = vmatpush1.msra.mxu0 0.0
        %367 = vmatprep.subr.mxu0 0.0
        %368 = vmatpush1.msra.mxu0 0.0
        %369 = vmatprep.subr.mxu0 0.0
        %370 = vmatpush1.msra.mxu0 0.0
        %371 = vmatprep.subr.mxu0 0.0
        %372 = vmatpush1.msra.mxu0 0.0
        %373 = vmatprep.subr.mxu0 0.0
        %374 = vmatpush1.msra.mxu0 0.0
        %375 = vmatprep.subr.mxu0 0.0
        %376 = vmatpush1.msra.mxu0 0.0
        %377 = vmatprep.subr.mxu0 0.0
        %378 = vmatpush1.msra.mxu0 0.0
        %379 = vmatprep.subr.mxu0 0.0
        %380 = vmatpush1.msra.mxu0 0.0
        %381 = vmatprep.subr.mxu0 0.0
        %382 = vmatpush1.msra.mxu0 0.0
        %383 = vmatprep.subr.mxu0 0.0
        %384 = vmatpush1.msra.mxu0 0.0
        %385 = vmatprep.subr.mxu0 0.0
        %386 = vmatpush1.msra.mxu0 0.0
        %387 = vmatprep.subr.mxu0 0.0
        %388 = vmatpush1.msra.mxu0 0.0
        %389 = vmatprep.subr.mxu0 0.0
        %390 = vmatpush1.msra.mxu0 0.0
        %391 = vmatprep.subr.mxu0 0.0
        %392 = vmatpush1.msra.mxu0 0.0
        %393 = vmatprep.subr.mxu0 0.0
        %394 = vmatpush1.msra.mxu0 0.0
        %395 = vmatprep.subr.mxu0 0.0
        %396 = vmatpush1.msra.mxu0 0.0
        %397 = vmatprep.subr.mxu0 0.0
        %398 = vmatpush1.msra.mxu0 0.0
        %399 = vmatprep.mubr.f32.mxu0 0.0
        %400 = vmatmul.mubr.f32.gmra.mrb[0].mxu0 %v312
        %v401 = vpop.f32.mrb[0].mxu0
        %v402 = vadd.f32 0.0, %v401
        %v403 = vpop.f32.mrb[0].mxu0
        %404 = vmatprep.mubr.f32.mxu0 0.0
        %405 = vmatmul.mubr.f32.gmra.mrb[0].mxu0 %v315
        %v406 = vpop.f32.mrb[0].mxu0
        %v407 = vadd.f32 0.0, %v406
        %v408 = vpop.f32.mrb[0].mxu0
        %409 = vmatprep.mubr.f32.mxu0 0.0
        %410 = vmatmul.mubr.f32.gmra.mrb[0].mxu0 %v318
        %v411 = vpop.f32.mrb[0].mxu0
        %v412 = vadd.f32 0.0, %v411
        %v413 = vpop.f32.mrb[0].mxu0
        %414 = vmatprep.mubr.f32.mxu0 0.0
        %415 = vmatmul.mubr.f32.gmra.mrb[0].mxu0 %v321
        %v416 = vpop.f32.mrb[0].mxu0
        %v417 = vadd.f32 0.0, %v416
        %v418 = vpop.f32.mrb[0].mxu0
        %419 = vmatprep.mubr.f32.mxu0 0.0
        %420 = vmatmul.mubr.f32.gmra.mrb[0].mxu0 %v324
        %v421 = vpop.f32.mrb[0].mxu0
        %v422 = vadd.f32 0.0, %v421
        %v423 = vpop.f32.mrb[0].mxu0
        %424 = vmatprep.mubr.f32.mxu0 0.0
        %425 = vmatmul.mubr.f32.gmra.mrb[0].mxu0 %v327
        %v426 = vpop.f32.mrb[0].mxu0
        %v427 = vadd.f32 0.0, %v426
        %v428 = vpop.f32.mrb[0].mxu0
        %429 = vmatprep.mubr.f32.mxu0 0.0
        %430 = vmatmul.mubr.f32.gmra.mrb[0].mxu0 %v330
        %v431 = vpop.f32.mrb[0].mxu0
        %v432 = vadd.f32 0.0, %v431
        %v433 = vpop.f32.mrb[0].mxu0
        %434 = vmatprep.mubr.f32.mxu0 0.0
        %435 = vmatmul.mubr.f32.gmra.mrb[0].mxu0 %v333
        %v436 = vpop.f32.mrb[0].mxu0
        %v437 = vadd.f32 0.0, %v436
        %v438 = vpop.f32.mrb[0].mxu0
        %439 = vdwg.mxu0
        %v440 = vxor.u32 %v402, 2147483648
        %v441 = vxor.u32 %v407, 2147483648
        %v442 = vxor.u32 %v412, 2147483648
        %v443 = vxor.u32 %v417, 2147483648
        %v444 = vxor.u32 %v422, 2147483648
        %v445 = vxor.u32 %v427, 2147483648
        %v446 = vxor.u32 %v432, 2147483648
        %v447 = vxor.u32 %v437, 2147483648
        %v448 = vmul.f32 %v440, 1.442695
        %v449 = vpow.pop %v448
        %v450 = vmul.f32 %v441, 1.442695
        %v451 = vpow.pop %v450
        %v452 = vmul.f32 %v442, 1.442695
        %v453 = vpow.pop %v452
        %v454 = vmul.f32 %v443, 1.442695
        %v455 = vpow.pop %v454
        %v456 = vmul.f32 %v444, 1.442695
        %v457 = vpow.pop %v456
        %v458 = vmul.f32 %v445, 1.442695
        %v459 = vpow.pop %v458
        %v460 = vmul.f32 %v446, 1.442695
        %v461 = vpow.pop %v460
        %v462 = vmul.f32 %v447, 1.442695
        %v463 = vpow.pop %v462
        %v464 = vadd.f32 %v449, 1.0
        %v465 = vadd.f32 %v451, 1.0
        %v466 = vadd.f32 %v453, 1.0
        %v467 = vadd.f32 %v455, 1.0
        %v468 = vadd.f32 %v457, 1.0
        %v469 = vadd.f32 %v459, 1.0
        %v470 = vadd.f32 %v461, 1.0
        %v471 = vadd.f32 %v463, 1.0
        %v472 = vrcp.pop %v464
        %v473 = vmul.f32 1.0, %v472
        %v474 = vrcp.pop %v465
        %v475 = vmul.f32 1.0, %v474
        %v476 = vrcp.pop %v466
        %v477 = vmul.f32 1.0, %v476
        %v478 = vrcp.pop %v467
        %v479 = vmul.f32 1.0, %v478
        %v480 = vrcp.pop %v468
        %v481 = vmul.f32 1.0, %v480
        %v482 = vrcp.pop %v469
        %v483 = vmul.f32 1.0, %v482
        %v484 = vrcp.pop %v470
        %v485 = vmul.f32 1.0, %v484
        %v486 = vrcp.pop %v471
        %v487 = vmul.f32 1.0, %v486
        %v488 = vsub.f32 1.0, %v473
        %v489 = vsub.f32 1.0, %v475
        %v490 = vsub.f32 1.0, %v477
        %v491 = vsub.f32 1.0, %v479
        %v492 = vsub.f32 1.0, %v481
        %v493 = vsub.f32 1.0, %v483
        %v494 = vsub.f32 1.0, %v485
        %v495 = vsub.f32 1.0, %v487
        %v496 = vmul.f32 %v473, %v473
        %v497 = vmul.f32 %v475, %v475
        %v498 = vmul.f32 %v477, %v477
        %v499 = vmul.f32 %v479, %v479
        %v500 = vmul.f32 %v481, %v481
        %v501 = vmul.f32 %v483, %v483
        %v502 = vmul.f32 %v485, %v485
        %v503 = vmul.f32 %v487, %v487
        %v504 = vmul.f32 %v488, %v488
        %v505 = vmul.f32 %v489, %v489
        %v506 = vmul.f32 %v490, %v490
        %v507 = vmul.f32 %v491, %v491
        %v508 = vmul.f32 %v492, %v492
        %v509 = vmul.f32 %v493, %v493
        %v510 = vmul.f32 %v494, %v494
        %v511 = vmul.f32 %v495, %v495
        %v512 = vmul.f32 %v496, 0.75
        %v513 = vmul.f32 %v497, 0.75
        %v514 = vmul.f32 %v498, 0.75
        %v515 = vmul.f32 %v499, 0.75
        %v516 = vmul.f32 %v500, 0.75
        %v517 = vmul.f32 %v501, 0.75
        %v518 = vmul.f32 %v502, 0.75
        %v519 = vmul.f32 %v503, 0.75
        %v520 = vadd.f32 %v488, 1e-08
        %v521 = vadd.f32 %v489, 1e-08
        %v522 = vadd.f32 %v490, 1e-08
        %v523 = vadd.f32 %v491, 1e-08
        %v524 = vadd.f32 %v492, 1e-08
        %v525 = vadd.f32 %v493, 1e-08
        %v526 = vadd.f32 %v494, 1e-08
        %v527 = vadd.f32 %v495, 1e-08
        %v528 = vlog2.pop %v520
        %v529 = vmul.f32 %v528, 0.6931472
        %v530 = vlog2.pop %v521
        %v531 = vmul.f32 %v530, 0.6931472
        %v532 = vlog2.pop %v522
        %v533 = vmul.f32 %v532, 0.6931472
        %v534 = vlog2.pop %v523
        %v535 = vmul.f32 %v534, 0.6931472
        %v536 = vlog2.pop %v524
        %v537 = vmul.f32 %v536, 0.6931472
        %v538 = vlog2.pop %v525
        %v539 = vmul.f32 %v538, 0.6931472
        %v540 = vlog2.pop %v526
        %v541 = vmul.f32 %v540, 0.6931472
        %v542 = vlog2.pop %v527
        %v543 = vmul.f32 %v542, 0.6931472
        %v544 = vsub.f32 0.0, %v529
        %v545 = vsub.f32 0.0, %v531
        %v546 = vsub.f32 0.0, %v533
        %v547 = vsub.f32 0.0, %v535
        %v548 = vsub.f32 0.0, %v537
        %v549 = vsub.f32 0.0, %v539
        %v550 = vsub.f32 0.0, %v541
        %v551 = vsub.f32 0.0, %v543
        %v552 = vmul.f32 %v512, %v544
        %v553 = vmul.f32 %v513, %v545
        %v554 = vmul.f32 %v514, %v546
        %v555 = vmul.f32 %v515, %v547
        %v556 = vmul.f32 %v516, %v548
        %v557 = vmul.f32 %v517, %v549
        %v558 = vmul.f32 %v518, %v550
        %v559 = vmul.f32 %v519, %v551
        %v560 = vmul.f32 %v504, 0.25
        %v561 = vmul.f32 %v505, 0.25
        %v562 = vmul.f32 %v506, 0.25
        %v563 = vmul.f32 %v507, 0.25
        %v564 = vmul.f32 %v508, 0.25
        %v565 = vmul.f32 %v509, 0.25
        %v566 = vmul.f32 %v510, 0.25
        %v567 = vmul.f32 %v511, 0.25
        %v568 = vadd.f32 %v473, 1e-08
        %v569 = vadd.f32 %v475, 1e-08
        %v570 = vadd.f32 %v477, 1e-08
        %v571 = vadd.f32 %v479, 1e-08
        %v572 = vadd.f32 %v481, 1e-08
        %v573 = vadd.f32 %v483, 1e-08
        %v574 = vadd.f32 %v485, 1e-08
        %v575 = vadd.f32 %v487, 1e-08
        %v576 = vlog2.pop %v568
        %v577 = vmul.f32 %v576, 0.6931472
        %v578 = vlog2.pop %v569
        %v579 = vmul.f32 %v578, 0.6931472
        %v580 = vlog2.pop %v570
        %v581 = vmul.f32 %v580, 0.6931472
        %v582 = vlog2.pop %v571
        %v583 = vmul.f32 %v582, 0.6931472
        %v584 = vlog2.pop %v572
        %v585 = vmul.f32 %v584, 0.6931472
        %v586 = vlog2.pop %v573
        %v587 = vmul.f32 %v586, 0.6931472
        %v588 = vlog2.pop %v574
        %v589 = vmul.f32 %v588, 0.6931472
        %v590 = vlog2.pop %v575
        %v591 = vmul.f32 %v590, 0.6931472
        %v592 = vsub.f32 0.0, %v577
        %v593 = vsub.f32 0.0, %v579
        %v594 = vsub.f32 0.0, %v581
        %v595 = vsub.f32 0.0, %v583
        %v596 = vsub.f32 0.0, %v585
        %v597 = vsub.f32 0.0, %v587
        %v598 = vsub.f32 0.0, %v589
        %v599 = vsub.f32 0.0, %v591
        %v600 = vmul.f32 %v560, %v592
        %v601 = vmul.f32 %v561, %v593
        %v602 = vmul.f32 %v562, %v594
        %v603 = vmul.f32 %v563, %v595
        %v604 = vmul.f32 %v564, %v596
        %v605 = vmul.f32 %v565, %v597
        %v606 = vmul.f32 %v566, %v598
        %v607 = vmul.f32 %v567, %v599
        %v608 = vsub.f32 %v600, %v552
        %v609 = vsub.f32 %v601, %v553
        %v610 = vsub.f32 %v602, %v554
        %v611 = vsub.f32 %v603, %v555
        %v612 = vsub.f32 %v604, %v556
        %v613 = vsub.f32 %v605, %v557
        %v614 = vsub.f32 %v606, %v558
        %v615 = vsub.f32 %v607, %v559
        %v616 = vld [vmem:[%s288] sm:$0xff]
        %v617 = vld [vmem:[%s288 + $0x8] sm:$0xff]
        %v618 = vld [vmem:[%s288 + $0x10] sm:$0xff]
        %v619 = vld [vmem:[%s288 + $0x18] sm:$0xff]
        %v620 = vld [vmem:[%s288 + $0x20] sm:$0xff]
        %v621 = vld [vmem:[%s288 + $0x28] sm:$0xff]
        %v622 = vld [vmem:[%s288 + $0x30] sm:$0xff]
        %v623 = vld [vmem:[%s288 + $0x38] sm:$0xff]
        %v624 = vld [vmem:[%s298] sm:$0xff]
        %626 = vset.pattern.permute.xlu0 0
        %627 = vperm.xlu0 %626, %v616
        %v628 = vpop.permute.xlu0 %627
        %631 = vset.pattern.permute.xlu0 0
        %632 = vperm.xlu0 %631, %v617
        %v633 = vpop.permute.xlu0 %632
        %636 = vset.pattern.permute.xlu0 0
        %637 = vperm.xlu0 %636, %v618
        %v638 = vpop.permute.xlu0 %637
        %641 = vset.pattern.permute.xlu0 0
        %642 = vperm.xlu0 %641, %v619
        %v643 = vpop.permute.xlu0 %642
        %646 = vset.pattern.permute.xlu0 0
        %647 = vperm.xlu0 %646, %v620
        %v648 = vpop.permute.xlu0 %647
        %651 = vset.pattern.permute.xlu0 0
        %652 = vperm.xlu0 %651, %v621
        %v653 = vpop.permute.xlu0 %652
        %656 = vset.pattern.permute.xlu0 0
        %657 = vperm.xlu0 %656, %v622
        %v658 = vpop.permute.xlu0 %657
        %661 = vset.pattern.permute.xlu0 0
        %662 = vperm.xlu0 %661, %v623
        %v663 = vpop.permute.xlu0 %662
        %v665 = vlaneseq
        %v666 = vshrl.u32 %v665, 7
        %v667 = vsub.s32 0, %v666
        %v668 = vrot.slane %v624, %v667
        %v669 = vsub.f32 %v628, %v668
        %v670 = vsub.f32 %v633, %v668
        %v671 = vsub.f32 %v638, %v668
        %v672 = vsub.f32 %v643, %v668
        %v673 = vsub.f32 %v648, %v668
        %v674 = vsub.f32 %v653, %v668
        %v675 = vsub.f32 %v658, %v668
        %v676 = vsub.f32 %v663, %v668
        %v677 = vand.u32 2147483647, %v669
        %v678 = vand.u32 2147483647, %v670
        %v679 = vand.u32 2147483647, %v671
        %v680 = vand.u32 2147483647, %v672
        %v681 = vand.u32 2147483647, %v673
        %v682 = vand.u32 2147483647, %v674
        %v683 = vand.u32 2147483647, %v675
        %v684 = vand.u32 2147483647, %v676
        %685 = vset.pattern.permute.xlu0 1
        %686 = vperm.xlu0 %685, %v616
        %v687 = vpop.permute.xlu0 %686
        %689 = vset.pattern.permute.xlu0 1
        %690 = vperm.xlu0 %689, %v617
        %v691 = vpop.permute.xlu0 %690
        %693 = vset.pattern.permute.xlu0 1
        %694 = vperm.xlu0 %693, %v618
        %v695 = vpop.permute.xlu0 %694
        %697 = vset.pattern.permute.xlu0 1
        %698 = vperm.xlu0 %697, %v619
        %v699 = vpop.permute.xlu0 %698
        %701 = vset.pattern.permute.xlu0 1
        %702 = vperm.xlu0 %701, %v620
        %v703 = vpop.permute.xlu0 %702
        %705 = vset.pattern.permute.xlu0 1
        %706 = vperm.xlu0 %705, %v621
        %v707 = vpop.permute.xlu0 %706
        %709 = vset.pattern.permute.xlu0 1
        %710 = vperm.xlu0 %709, %v622
        %v711 = vpop.permute.xlu0 %710
        %713 = vset.pattern.permute.xlu0 1
        %714 = vperm.xlu0 %713, %v623
        %v715 = vpop.permute.xlu0 %714
        %v717 = vlaneseq
        %v718 = vshrl.u32 %v717, 7
        %v719 = vsub.s32 1, %v718
        %v720 = vrot.slane %v624, %v719
        %v721 = vsub.f32 %v687, %v720
        %v722 = vsub.f32 %v691, %v720
        %v723 = vsub.f32 %v695, %v720
        %v724 = vsub.f32 %v699, %v720
        %v725 = vsub.f32 %v703, %v720
        %v726 = vsub.f32 %v707, %v720
        %v727 = vsub.f32 %v711, %v720
        %v728 = vsub.f32 %v715, %v720
        %v729 = vand.u32 2147483647, %v721
        %v730 = vand.u32 2147483647, %v722
        %v731 = vand.u32 2147483647, %v723
        %v732 = vand.u32 2147483647, %v724
        %v733 = vand.u32 2147483647, %v725
        %v734 = vand.u32 2147483647, %v726
        %v735 = vand.u32 2147483647, %v727
        %v736 = vand.u32 2147483647, %v728
        %v737 = vadd.f32 %v677, %v729
        %v738 = vadd.f32 %v678, %v730
        %v739 = vadd.f32 %v679, %v731
        %v740 = vadd.f32 %v680, %v732
        %v741 = vadd.f32 %v681, %v733
        %v742 = vadd.f32 %v682, %v734
        %v743 = vadd.f32 %v683, %v735
        %v744 = vadd.f32 %v684, %v736
        %745 = vset.pattern.permute.xlu0 2
        %746 = vperm.xlu0 %745, %v616
        %v747 = vpop.permute.xlu0 %746
        %749 = vset.pattern.permute.xlu0 2
        %750 = vperm.xlu0 %749, %v617
        %v751 = vpop.permute.xlu0 %750
        %753 = vset.pattern.permute.xlu0 2
        %754 = vperm.xlu0 %753, %v618
        %v755 = vpop.permute.xlu0 %754
        %757 = vset.pattern.permute.xlu0 2
        %758 = vperm.xlu0 %757, %v619
        %v759 = vpop.permute.xlu0 %758
        %761 = vset.pattern.permute.xlu0 2
        %762 = vperm.xlu0 %761, %v620
        %v763 = vpop.permute.xlu0 %762
        %765 = vset.pattern.permute.xlu0 2
        %766 = vperm.xlu0 %765, %v621
        %v767 = vpop.permute.xlu0 %766
        %769 = vset.pattern.permute.xlu0 2
        %770 = vperm.xlu0 %769, %v622
        %v771 = vpop.permute.xlu0 %770
        %773 = vset.pattern.permute.xlu0 2
        %774 = vperm.xlu0 %773, %v623
        %v775 = vpop.permute.xlu0 %774
        %v777 = vlaneseq
        %v778 = vshrl.u32 %v777, 7
        %v779 = vsub.s32 2, %v778
        %v780 = vrot.slane %v624, %v779
        %v781 = vsub.f32 %v747, %v780
        %v782 = vsub.f32 %v751, %v780
        %v783 = vsub.f32 %v755, %v780
        %v784 = vsub.f32 %v759, %v780
        %v785 = vsub.f32 %v763, %v780
        %v786 = vsub.f32 %v767, %v780
        %v787 = vsub.f32 %v771, %v780
        %v788 = vsub.f32 %v775, %v780
        %v789 = vand.u32 2147483647, %v781
        %v790 = vand.u32 2147483647, %v782
        %v791 = vand.u32 2147483647, %v783
        %v792 = vand.u32 2147483647, %v784
        %v793 = vand.u32 2147483647, %v785
        %v794 = vand.u32 2147483647, %v786
        %v795 = vand.u32 2147483647, %v787
        %v796 = vand.u32 2147483647, %v788
        %v797 = vadd.f32 %v737, %v789
        %v798 = vadd.f32 %v738, %v790
        %v799 = vadd.f32 %v739, %v791
        %v800 = vadd.f32 %v740, %v792
        %v801 = vadd.f32 %v741, %v793
        %v802 = vadd.f32 %v742, %v794
        %v803 = vadd.f32 %v743, %v795
        %v804 = vadd.f32 %v744, %v796
        %805 = vset.pattern.permute.xlu0 3
        %806 = vperm.xlu0 %805, %v616
        %v807 = vpop.permute.xlu0 %806
        %809 = vset.pattern.permute.xlu0 3
        %810 = vperm.xlu0 %809, %v617
        %v811 = vpop.permute.xlu0 %810
        %813 = vset.pattern.permute.xlu0 3
        %814 = vperm.xlu0 %813, %v618
        %v815 = vpop.permute.xlu0 %814
        %817 = vset.pattern.permute.xlu0 3
        %818 = vperm.xlu0 %817, %v619
        %v819 = vpop.permute.xlu0 %818
        %821 = vset.pattern.permute.xlu0 3
        %822 = vperm.xlu0 %821, %v620
        %v823 = vpop.permute.xlu0 %822
        %825 = vset.pattern.permute.xlu0 3
        %826 = vperm.xlu0 %825, %v621
        %v827 = vpop.permute.xlu0 %826
        %829 = vset.pattern.permute.xlu0 3
        %830 = vperm.xlu0 %829, %v622
        %v831 = vpop.permute.xlu0 %830
        %833 = vset.pattern.permute.xlu0 3
        %834 = vperm.xlu0 %833, %v623
        %v835 = vpop.permute.xlu0 %834
        %v837 = vlaneseq
        %v838 = vshrl.u32 %v837, 7
        %v839 = vsub.s32 3, %v838
        %v840 = vrot.slane %v624, %v839
        %v841 = vsub.f32 %v807, %v840
        %v842 = vsub.f32 %v811, %v840
        %v843 = vsub.f32 %v815, %v840
        %v844 = vsub.f32 %v819, %v840
        %v845 = vsub.f32 %v823, %v840
        %v846 = vsub.f32 %v827, %v840
        %v847 = vsub.f32 %v831, %v840
        %v848 = vsub.f32 %v835, %v840
        %v849 = vand.u32 2147483647, %v841
        %v850 = vand.u32 2147483647, %v842
        %v851 = vand.u32 2147483647, %v843
        %v852 = vand.u32 2147483647, %v844
        %v853 = vand.u32 2147483647, %v845
        %v854 = vand.u32 2147483647, %v846
        %v855 = vand.u32 2147483647, %v847
        %v856 = vand.u32 2147483647, %v848
        %v857 = vadd.f32 %v797, %v849
        %v858 = vadd.f32 %v798, %v850
        %v859 = vadd.f32 %v799, %v851
        %v860 = vadd.f32 %v800, %v852
        %v861 = vadd.f32 %v801, %v853
        %v862 = vadd.f32 %v802, %v854
        %v863 = vadd.f32 %v803, %v855
        %v864 = vadd.f32 %v804, %v856
        %v865 = vmul.f32 %v616, 0.5
        %v866 = vmul.f32 %v617, 0.5
        %v867 = vmul.f32 %v618, 0.5
        %v868 = vmul.f32 %v619, 0.5
        %v869 = vmul.f32 %v620, 0.5
        %v870 = vmul.f32 %v621, 0.5
        %v871 = vmul.f32 %v622, 0.5
        %v872 = vmul.f32 %v623, 0.5
        %881 = vrot.lane.b32.xlu0 %v865, 126
        %v882 = vpop.permute.xlu0 %881
        %883 = vrot.lane.b32.xlu0 %v866, 126
        %v884 = vpop.permute.xlu0 %883
        %885 = vrot.lane.b32.xlu0 %v867, 126
        %v886 = vpop.permute.xlu0 %885
        %887 = vrot.lane.b32.xlu0 %v868, 126
        %v888 = vpop.permute.xlu0 %887
        %889 = vrot.lane.b32.xlu0 %v869, 126
        %v890 = vpop.permute.xlu0 %889
        %891 = vrot.lane.b32.xlu0 %v870, 126
        %v892 = vpop.permute.xlu0 %891
        %893 = vrot.lane.b32.xlu0 %v871, 126
        %v894 = vpop.permute.xlu0 %893
        %895 = vrot.lane.b32.xlu0 %v872, 126
        %v896 = vpop.permute.xlu0 %895
        %v905 = vsub.f32 %v616, %v882
        %v906 = vsub.f32 %v617, %v884
        %v907 = vsub.f32 %v618, %v886
        %v908 = vsub.f32 %v619, %v888
        %v909 = vsub.f32 %v620, %v890
        %v910 = vsub.f32 %v621, %v892
        %v911 = vsub.f32 %v622, %v894
        %v912 = vsub.f32 %v623, %v896
        %v913 = vadd.f32 %v616, %v882
        %v914 = vadd.f32 %v617, %v884
        %v915 = vadd.f32 %v618, %v886
        %v916 = vadd.f32 %v619, %v888
        %v917 = vadd.f32 %v620, %v890
        %v918 = vadd.f32 %v621, %v892
        %v919 = vadd.f32 %v622, %v894
        %v920 = vadd.f32 %v623, %v896
        %v921 = vsub.f32 %v913, %v905
        %v922 = vsub.f32 %v914, %v906
        %v923 = vsub.f32 %v915, %v907
        %v924 = vsub.f32 %v916, %v908
        %v925 = vsub.f32 %v917, %v909
        %v926 = vsub.f32 %v918, %v910
        %v927 = vsub.f32 %v919, %v911
        %v928 = vsub.f32 %v920, %v912
        %937 = vrot.lane.b32.xlu0 %v921, 127
        %v938 = vpop.permute.xlu0 %937
        %939 = vrot.lane.b32.xlu0 %v922, 127
        %v940 = vpop.permute.xlu0 %939
        %941 = vrot.lane.b32.xlu0 %v923, 127
        %v942 = vpop.permute.xlu0 %941
        %943 = vrot.lane.b32.xlu0 %v924, 127
        %v944 = vpop.permute.xlu0 %943
        %945 = vrot.lane.b32.xlu0 %v925, 127
        %v946 = vpop.permute.xlu0 %945
        %947 = vrot.lane.b32.xlu0 %v926, 127
        %v948 = vpop.permute.xlu0 %947
        %949 = vrot.lane.b32.xlu0 %v927, 127
        %v950 = vpop.permute.xlu0 %949
        %951 = vrot.lane.b32.xlu0 %v928, 127
        %v952 = vpop.permute.xlu0 %951
        %v961 = vmul.f32 %v921, %v938
        %v962 = vmul.f32 %v922, %v940
        %v963 = vmul.f32 %v923, %v942
        %v964 = vmul.f32 %v924, %v944
        %v965 = vmul.f32 %v925, %v946
        %v966 = vmul.f32 %v926, %v948
        %v967 = vmul.f32 %v927, %v950
        %v968 = vmul.f32 %v928, %v952
        %v970 = vrot.slane %v624, 6
        %v972 = vsub.f32 %v624, %v970
        %v974 = vrot.slane %v972, 1
        %v976 = vmul.f32 %v972, %v974
        %978 = vset.pattern.permute.xlu0 0
        %979 = vperm.xlu0 %978, %v913
        %v980 = vpop.permute.xlu0 %979
        %983 = vset.pattern.permute.xlu0 0
        %984 = vperm.xlu0 %983, %v914
        %v985 = vpop.permute.xlu0 %984
        %988 = vset.pattern.permute.xlu0 0
        %989 = vperm.xlu0 %988, %v915
        %v990 = vpop.permute.xlu0 %989
        %993 = vset.pattern.permute.xlu0 0
        %994 = vperm.xlu0 %993, %v916
        %v995 = vpop.permute.xlu0 %994
        %998 = vset.pattern.permute.xlu0 0
        %999 = vperm.xlu0 %998, %v917
        %v1000 = vpop.permute.xlu0 %999
        %1003 = vset.pattern.permute.xlu0 0
        %1004 = vperm.xlu0 %1003, %v918
        %v1005 = vpop.permute.xlu0 %1004
        %1008 = vset.pattern.permute.xlu0 0
        %1009 = vperm.xlu0 %1008, %v919
        %v1010 = vpop.permute.xlu0 %1009
        %1013 = vset.pattern.permute.xlu0 0
        %1014 = vperm.xlu0 %1013, %v920
        %v1015 = vpop.permute.xlu0 %1014
        %v1017 = vlaneseq
        %v1018 = vshrl.u32 %v1017, 7
        %v1019 = vsub.s32 6, %v1018
        %v1020 = vrot.slane %v624, %v1019
        %v1021 = vmin.f32 %v980, %v1020
        %v1022 = vmin.f32 %v985, %v1020
        %v1023 = vmin.f32 %v990, %v1020
        %v1024 = vmin.f32 %v995, %v1020
        %v1025 = vmin.f32 %v1000, %v1020
        %v1026 = vmin.f32 %v1005, %v1020
        %v1027 = vmin.f32 %v1010, %v1020
        %v1028 = vmin.f32 %v1015, %v1020
        %1030 = vset.pattern.permute.xlu0 0
        %1031 = vperm.xlu0 %1030, %v905
        %v1032 = vpop.permute.xlu0 %1031
        %1035 = vset.pattern.permute.xlu0 0
        %1036 = vperm.xlu0 %1035, %v906
        %v1037 = vpop.permute.xlu0 %1036
        %1040 = vset.pattern.permute.xlu0 0
        %1041 = vperm.xlu0 %1040, %v907
        %v1042 = vpop.permute.xlu0 %1041
        %1045 = vset.pattern.permute.xlu0 0
        %1046 = vperm.xlu0 %1045, %v908
        %v1047 = vpop.permute.xlu0 %1046
        %1050 = vset.pattern.permute.xlu0 0
        %1051 = vperm.xlu0 %1050, %v909
        %v1052 = vpop.permute.xlu0 %1051
        %1055 = vset.pattern.permute.xlu0 0
        %1056 = vperm.xlu0 %1055, %v910
        %v1057 = vpop.permute.xlu0 %1056
        %1060 = vset.pattern.permute.xlu0 0
        %1061 = vperm.xlu0 %1060, %v911
        %v1062 = vpop.permute.xlu0 %1061
        %1065 = vset.pattern.permute.xlu0 0
        %1066 = vperm.xlu0 %1065, %v912
        %v1067 = vpop.permute.xlu0 %1066
        %v1069 = vlaneseq
        %v1070 = vshrl.u32 %v1069, 7
        %v1071 = vsub.s32 4, %v1070
        %v1072 = vrot.slane %v624, %v1071
        %v1073 = vmax.f32 %v1032, %v1072
        %v1074 = vmax.f32 %v1037, %v1072
        %v1075 = vmax.f32 %v1042, %v1072
        %v1076 = vmax.f32 %v1047, %v1072
        %v1077 = vmax.f32 %v1052, %v1072
        %v1078 = vmax.f32 %v1057, %v1072
        %v1079 = vmax.f32 %v1062, %v1072
        %v1080 = vmax.f32 %v1067, %v1072
        %v1081 = vsub.f32 %v1021, %v1073
        %v1082 = vsub.f32 %v1022, %v1074
        %v1083 = vsub.f32 %v1023, %v1075
        %v1084 = vsub.f32 %v1024, %v1076
        %v1085 = vsub.f32 %v1025, %v1077
        %v1086 = vsub.f32 %v1026, %v1078
        %v1087 = vsub.f32 %v1027, %v1079
        %v1088 = vsub.f32 %v1028, %v1080
        %v1089 = vmax.f32 %v1081, 0.0
        %v1090 = vmax.f32 %v1082, 0.0
        %v1091 = vmax.f32 %v1083, 0.0
        %v1092 = vmax.f32 %v1084, 0.0
        %v1093 = vmax.f32 %v1085, 0.0
        %v1094 = vmax.f32 %v1086, 0.0
        %v1095 = vmax.f32 %v1087, 0.0
        %v1096 = vmax.f32 %v1088, 0.0
        %1097 = vset.pattern.permute.xlu0 1
        %1098 = vperm.xlu0 %1097, %v913
        %v1099 = vpop.permute.xlu0 %1098
        %1101 = vset.pattern.permute.xlu0 1
        %1102 = vperm.xlu0 %1101, %v914
        %v1103 = vpop.permute.xlu0 %1102
        %1105 = vset.pattern.permute.xlu0 1
        %1106 = vperm.xlu0 %1105, %v915
        %v1107 = vpop.permute.xlu0 %1106
        %1109 = vset.pattern.permute.xlu0 1
        %1110 = vperm.xlu0 %1109, %v916
        %v1111 = vpop.permute.xlu0 %1110
        %1113 = vset.pattern.permute.xlu0 1
        %1114 = vperm.xlu0 %1113, %v917
        %v1115 = vpop.permute.xlu0 %1114
        %1117 = vset.pattern.permute.xlu0 1
        %1118 = vperm.xlu0 %1117, %v918
        %v1119 = vpop.permute.xlu0 %1118
        %1121 = vset.pattern.permute.xlu0 1
        %1122 = vperm.xlu0 %1121, %v919
        %v1123 = vpop.permute.xlu0 %1122
        %1125 = vset.pattern.permute.xlu0 1
        %1126 = vperm.xlu0 %1125, %v920
        %v1127 = vpop.permute.xlu0 %1126
        %v1129 = vlaneseq
        %v1130 = vshrl.u32 %v1129, 7
        %v1131 = vsub.s32 7, %v1130
        %v1132 = vrot.slane %v624, %v1131
        %v1133 = vmin.f32 %v1099, %v1132
        %v1134 = vmin.f32 %v1103, %v1132
        %v1135 = vmin.f32 %v1107, %v1132
        %v1136 = vmin.f32 %v1111, %v1132
        %v1137 = vmin.f32 %v1115, %v1132
        %v1138 = vmin.f32 %v1119, %v1132
        %v1139 = vmin.f32 %v1123, %v1132
        %v1140 = vmin.f32 %v1127, %v1132
        %1141 = vset.pattern.permute.xlu0 1
        %1142 = vperm.xlu0 %1141, %v905
        %v1143 = vpop.permute.xlu0 %1142
        %1145 = vset.pattern.permute.xlu0 1
        %1146 = vperm.xlu0 %1145, %v906
        %v1147 = vpop.permute.xlu0 %1146
        %1149 = vset.pattern.permute.xlu0 1
        %1150 = vperm.xlu0 %1149, %v907
        %v1151 = vpop.permute.xlu0 %1150
        %1153 = vset.pattern.permute.xlu0 1
        %1154 = vperm.xlu0 %1153, %v908
        %v1155 = vpop.permute.xlu0 %1154
        %1157 = vset.pattern.permute.xlu0 1
        %1158 = vperm.xlu0 %1157, %v909
        %v1159 = vpop.permute.xlu0 %1158
        %1161 = vset.pattern.permute.xlu0 1
        %1162 = vperm.xlu0 %1161, %v910
        %v1163 = vpop.permute.xlu0 %1162
        %1165 = vset.pattern.permute.xlu0 1
        %1166 = vperm.xlu0 %1165, %v911
        %v1167 = vpop.permute.xlu0 %1166
        %1169 = vset.pattern.permute.xlu0 1
        %1170 = vperm.xlu0 %1169, %v912
        %v1171 = vpop.permute.xlu0 %1170
        %v1173 = vlaneseq
        %v1174 = vshrl.u32 %v1173, 7
        %v1175 = vsub.s32 5, %v1174
        %v1176 = vrot.slane %v624, %v1175
        %v1177 = vmax.f32 %v1143, %v1176
        %v1178 = vmax.f32 %v1147, %v1176
        %v1179 = vmax.f32 %v1151, %v1176
        %v1180 = vmax.f32 %v1155, %v1176
        %v1181 = vmax.f32 %v1159, %v1176
        %v1182 = vmax.f32 %v1163, %v1176
        %v1183 = vmax.f32 %v1167, %v1176
        %v1184 = vmax.f32 %v1171, %v1176
        %v1185 = vsub.f32 %v1133, %v1177
        %v1186 = vsub.f32 %v1134, %v1178
        %v1187 = vsub.f32 %v1135, %v1179
        %v1188 = vsub.f32 %v1136, %v1180
        %v1189 = vsub.f32 %v1137, %v1181
        %v1190 = vsub.f32 %v1138, %v1182
        %v1191 = vsub.f32 %v1139, %v1183
        %v1192 = vsub.f32 %v1140, %v1184
        %v1193 = vmax.f32 %v1185, 0.0
        %v1194 = vmax.f32 %v1186, 0.0
        %v1195 = vmax.f32 %v1187, 0.0
        %v1196 = vmax.f32 %v1188, 0.0
        %v1197 = vmax.f32 %v1189, 0.0
        %v1198 = vmax.f32 %v1190, 0.0
        %v1199 = vmax.f32 %v1191, 0.0
        %v1200 = vmax.f32 %v1192, 0.0
        %v1201 = vmul.f32 %v1089, %v1193
        %v1202 = vmul.f32 %v1090, %v1194
        %v1203 = vmul.f32 %v1091, %v1195
        %v1204 = vmul.f32 %v1092, %v1196
        %v1205 = vmul.f32 %v1093, %v1197
        %v1206 = vmul.f32 %v1094, %v1198
        %v1207 = vmul.f32 %v1095, %v1199
        %v1208 = vmul.f32 %v1096, %v1200
        %1210 = vset.pattern.permute.xlu0 0
        %1211 = vperm.xlu0 %1210, %v961
        %v1212 = vpop.permute.xlu0 %1211
        %1215 = vset.pattern.permute.xlu0 0
        %1216 = vperm.xlu0 %1215, %v962
        %v1217 = vpop.permute.xlu0 %1216
        %1220 = vset.pattern.permute.xlu0 0
        %1221 = vperm.xlu0 %1220, %v963
        %v1222 = vpop.permute.xlu0 %1221
        %1225 = vset.pattern.permute.xlu0 0
        %1226 = vperm.xlu0 %1225, %v964
        %v1227 = vpop.permute.xlu0 %1226
        %1230 = vset.pattern.permute.xlu0 0
        %1231 = vperm.xlu0 %1230, %v965
        %v1232 = vpop.permute.xlu0 %1231
        %1235 = vset.pattern.permute.xlu0 0
        %1236 = vperm.xlu0 %1235, %v966
        %v1237 = vpop.permute.xlu0 %1236
        %1240 = vset.pattern.permute.xlu0 0
        %1241 = vperm.xlu0 %1240, %v967
        %v1242 = vpop.permute.xlu0 %1241
        %1245 = vset.pattern.permute.xlu0 0
        %1246 = vperm.xlu0 %1245, %v968
        %v1247 = vpop.permute.xlu0 %1246
        %v1249 = vlaneseq
        %v1250 = vshrl.u32 %v1249, 7
        %v1251 = vsub.s32 6, %v1250
        %v1252 = vrot.slane %v976, %v1251
        %v1253 = vadd.f32 %v1212, %v1252
        %v1254 = vadd.f32 %v1217, %v1252
        %v1255 = vadd.f32 %v1222, %v1252
        %v1256 = vadd.f32 %v1227, %v1252
        %v1257 = vadd.f32 %v1232, %v1252
        %v1258 = vadd.f32 %v1237, %v1252
        %v1259 = vadd.f32 %v1242, %v1252
        %v1260 = vadd.f32 %v1247, %v1252
        %v1261 = vsub.f32 %v1253, %v1201
        %v1262 = vsub.f32 %v1254, %v1202
        %v1263 = vsub.f32 %v1255, %v1203
        %v1264 = vsub.f32 %v1256, %v1204
        %v1265 = vsub.f32 %v1257, %v1205
        %v1266 = vsub.f32 %v1258, %v1206
        %v1267 = vsub.f32 %v1259, %v1207
        %v1268 = vsub.f32 %v1260, %v1208
        %v1269 = vrcp.pop %v1261
        %v1270 = vrcp.pop %v1262
        %v1271 = vrcp.pop %v1263
        %v1272 = vrcp.pop %v1264
        %v1273 = vrcp.pop %v1265
        %v1274 = vrcp.pop %v1266
        %v1275 = vrcp.pop %v1267
        %v1276 = vrcp.pop %v1268
        %v1277 = vmul.f32 %v1201, %v1269
        %v1278 = vmul.f32 %v1202, %v1270
        %v1279 = vmul.f32 %v1203, %v1271
        %v1280 = vmul.f32 %v1204, %v1272
        %v1281 = vmul.f32 %v1205, %v1273
        %v1282 = vmul.f32 %v1206, %v1274
        %v1283 = vmul.f32 %v1207, %v1275
        %v1284 = vmul.f32 %v1208, %v1276
        %v1285 = vmax.f32 %v980, %v1020
        %v1286 = vmax.f32 %v985, %v1020
        %v1287 = vmax.f32 %v990, %v1020
        %v1288 = vmax.f32 %v995, %v1020
        %v1289 = vmax.f32 %v1000, %v1020
        %v1290 = vmax.f32 %v1005, %v1020
        %v1291 = vmax.f32 %v1010, %v1020
        %v1292 = vmax.f32 %v1015, %v1020
        %v1293 = vmin.f32 %v1032, %v1072
        %v1294 = vmin.f32 %v1037, %v1072
        %v1295 = vmin.f32 %v1042, %v1072
        %v1296 = vmin.f32 %v1047, %v1072
        %v1297 = vmin.f32 %v1052, %v1072
        %v1298 = vmin.f32 %v1057, %v1072
        %v1299 = vmin.f32 %v1062, %v1072
        %v1300 = vmin.f32 %v1067, %v1072
        %v1301 = vsub.f32 %v1285, %v1293
        %v1302 = vsub.f32 %v1286, %v1294
        %v1303 = vsub.f32 %v1287, %v1295
        %v1304 = vsub.f32 %v1288, %v1296
        %v1305 = vsub.f32 %v1289, %v1297
        %v1306 = vsub.f32 %v1290, %v1298
        %v1307 = vsub.f32 %v1291, %v1299
        %v1308 = vsub.f32 %v1292, %v1300
        %v1309 = vmax.f32 %v1099, %v1132
        %v1310 = vmax.f32 %v1103, %v1132
        %v1311 = vmax.f32 %v1107, %v1132
        %v1312 = vmax.f32 %v1111, %v1132
        %v1313 = vmax.f32 %v1115, %v1132
        %v1314 = vmax.f32 %v1119, %v1132
        %v1315 = vmax.f32 %v1123, %v1132
        %v1316 = vmax.f32 %v1127, %v1132
        %v1317 = vmin.f32 %v1143, %v1176
        %v1318 = vmin.f32 %v1147, %v1176
        %v1319 = vmin.f32 %v1151, %v1176
        %v1320 = vmin.f32 %v1155, %v1176
        %v1321 = vmin.f32 %v1159, %v1176
        %v1322 = vmin.f32 %v1163, %v1176
        %v1323 = vmin.f32 %v1167, %v1176
        %v1324 = vmin.f32 %v1171, %v1176
        %v1325 = vsub.f32 %v1309, %v1317
        %v1326 = vsub.f32 %v1310, %v1318
        %v1327 = vsub.f32 %v1311, %v1319
        %v1328 = vsub.f32 %v1312, %v1320
        %v1329 = vsub.f32 %v1313, %v1321
        %v1330 = vsub.f32 %v1314, %v1322
        %v1331 = vsub.f32 %v1315, %v1323
        %v1332 = vsub.f32 %v1316, %v1324
        %v1333 = vmul.f32 %v1301, %v1325
        %v1334 = vmul.f32 %v1302, %v1326
        %v1335 = vmul.f32 %v1303, %v1327
        %v1336 = vmul.f32 %v1304, %v1328
        %v1337 = vmul.f32 %v1305, %v1329
        %v1338 = vmul.f32 %v1306, %v1330
        %v1339 = vmul.f32 %v1307, %v1331
        %v1340 = vmul.f32 %v1308, %v1332
        %v1341 = vsub.f32 %v1333, %v1261
        %v1342 = vsub.f32 %v1334, %v1262
        %v1343 = vsub.f32 %v1335, %v1263
        %v1344 = vsub.f32 %v1336, %v1264
        %v1345 = vsub.f32 %v1337, %v1265
        %v1346 = vsub.f32 %v1338, %v1266
        %v1347 = vsub.f32 %v1339, %v1267
        %v1348 = vsub.f32 %v1340, %v1268
        %v1349 = vrcp.pop %v1333
        %v1350 = vrcp.pop %v1334
        %v1351 = vrcp.pop %v1335
        %v1352 = vrcp.pop %v1336
        %v1353 = vrcp.pop %v1337
        %v1354 = vrcp.pop %v1338
        %v1355 = vrcp.pop %v1339
        %v1356 = vrcp.pop %v1340
        %v1357 = vmul.f32 %v1341, %v1349
        %v1358 = vmul.f32 %v1342, %v1350
        %v1359 = vmul.f32 %v1343, %v1351
        %v1360 = vmul.f32 %v1344, %v1352
        %v1361 = vmul.f32 %v1345, %v1353
        %v1362 = vmul.f32 %v1346, %v1354
        %v1363 = vmul.f32 %v1347, %v1355
        %v1364 = vmul.f32 %v1348, %v1356
        %v1365 = vsub.f32 %v1277, %v1357
        %v1366 = vsub.f32 %v1278, %v1358
        %v1367 = vsub.f32 %v1279, %v1359
        %v1368 = vsub.f32 %v1280, %v1360
        %v1369 = vsub.f32 %v1281, %v1361
        %v1370 = vsub.f32 %v1282, %v1362
        %v1371 = vsub.f32 %v1283, %v1363
        %v1372 = vsub.f32 %v1284, %v1364
        %v1373 = vmul.f32 %v857, 5.0
        %v1374 = vmul.f32 %v858, 5.0
        %v1375 = vmul.f32 %v859, 5.0
        %v1376 = vmul.f32 %v860, 5.0
        %v1377 = vmul.f32 %v861, 5.0
        %v1378 = vmul.f32 %v862, 5.0
        %v1379 = vmul.f32 %v863, 5.0
        %v1380 = vmul.f32 %v864, 5.0
        %v1381 = vmul.f32 %v608, 2.0
        %v1382 = vmul.f32 %v609, 2.0
        %v1383 = vmul.f32 %v610, 2.0
        %v1384 = vmul.f32 %v611, 2.0
        %v1385 = vmul.f32 %v612, 2.0
        %v1386 = vmul.f32 %v613, 2.0
        %v1387 = vmul.f32 %v614, 2.0
        %v1388 = vmul.f32 %v615, 2.0
        %v1389 = vadd.f32 %v1373, %v1381
        %v1390 = vadd.f32 %v1374, %v1382
        %v1391 = vadd.f32 %v1375, %v1383
        %v1392 = vadd.f32 %v1376, %v1384
        %v1393 = vadd.f32 %v1377, %v1385
        %v1394 = vadd.f32 %v1378, %v1386
        %v1395 = vadd.f32 %v1379, %v1387
        %v1396 = vadd.f32 %v1380, %v1388
        %v1397 = vsub.f32 0.0, %v1365
        %v1398 = vsub.f32 0.0, %v1366
        %v1399 = vsub.f32 0.0, %v1367
        %v1400 = vsub.f32 0.0, %v1368
        %v1401 = vsub.f32 0.0, %v1369
        %v1402 = vsub.f32 0.0, %v1370
        %v1403 = vsub.f32 0.0, %v1371
        %v1404 = vsub.f32 0.0, %v1372
        %v1405 = vmul.f32 %v1397, 2.0
        %v1406 = vmul.f32 %v1398, 2.0
        %v1407 = vmul.f32 %v1399, 2.0
        %v1408 = vmul.f32 %v1400, 2.0
        %v1409 = vmul.f32 %v1401, 2.0
        %v1410 = vmul.f32 %v1402, 2.0
        %v1411 = vmul.f32 %v1403, 2.0
        %v1412 = vmul.f32 %v1404, 2.0
        %v1413 = vadd.f32 %v1389, %v1405
        %v1414 = vadd.f32 %v1390, %v1406
        %v1415 = vadd.f32 %v1391, %v1407
        %v1416 = vadd.f32 %v1392, %v1408
        %v1417 = vadd.f32 %v1393, %v1409
        %v1418 = vadd.f32 %v1394, %v1410
        %v1419 = vadd.f32 %v1395, %v1411
        %v1420 = vadd.f32 %v1396, %v1412
        %1421 = vst [vmem:[%s269] sm:$0xff] %v1413
        %1422 = vst [vmem:[%s269 + $0x8] sm:$0xff] %v1414
        %1423 = vst [vmem:[%s269 + $0x10] sm:$0xff] %v1415
        %1424 = vst [vmem:[%s269 + $0x18] sm:$0xff] %v1416
        %1425 = vst [vmem:[%s269 + $0x20] sm:$0xff] %v1417
        %1426 = vst [vmem:[%s269 + $0x28] sm:$0xff] %v1418
        %1427 = vst [vmem:[%s269 + $0x30] sm:$0xff] %v1419
        %1428 = vst [vmem:[%s269 + $0x38] sm:$0xff] %v1420
        %s1429 = sand.u32 %s148, 1
        %s1430 = scalar_lea.sflag [#allocation3], %s1429
        %s1431 = sand.u32 %s148, 1
        %s1432 = smul.addr %s1431, 64
        %s1433 = scalar_lea.vmem [#allocation2], %s1432
        // Predicated region
        $region37: #{compute_cost_matrices.1} parent=35 // pred_check
          %p1434 = pneg %p158
        $region38: #{compute_cost_matrices.1} parent=35 // pred_check_branch
          %1436 = sbr.rel (%p1434) target = $region40
        $region39: #{compute_cost_matrices.1} parent=35 // pred_region
          %s1437 = smul.u32 8, %s23
          %s1439 = ssub.s32 1024, 1024
          %1440 = vsyncadd %s1430, %s1439
          %s1441 = smul.addr %s22, 8
          %s1442 = sadd.s32 %s1437, %s1441
          %s1443 = smul.addr %s1442, 128
          %s1444 = scalar_lea.hbm %s4, %s1443
          %s1445 = sshll.u32 %s1433, 4
          %s1446 = int_to_ptr.vmem [resolvable:$true] %s1445
          %1451 = dma.vmem_to_hbm [thread:$0]  %s1446, 1024, %s1444, %s1430, 128, 128, 8
        $region40: #{compute_cost_matrices.1} parent=35 // pred_fallthru
          _
      $region36: #{compute_cost_matrices.1} parent=5 // pred_fallthru
        _
      %p1452 = scmp.le.s32.totalorder 2, %s13
      // Predicated region
      $region41: #{compute_cost_matrices.1} parent=5 // pred_check
        %p1453 = pneg %p1452
      $region42: #{compute_cost_matrices.1} parent=5 // pred_check_branch
        %1455 = sbr.rel (%p1453) target = $region44
      $region43: #{compute_cost_matrices.1} parent=5 // pred_region
        %s1456 = ssub.s32 %s13, 2
        // Predicated region
        $region45: #{compute_cost_matrices.1} parent=43 // pred_check
          %p1457 = pneg %p164
        $region46: #{compute_cost_matrices.1} parent=43 // pred_check_branch
          %1459 = sbr.rel (%p1457) target = $region48
        $region47: #{compute_cost_matrices.1} parent=43 // pred_region
          %s1460 = sand.u32 %s149, 1
          %s1461 = scalar_lea.sflag [#allocation3], %s1460
          %s1462 = sand.u32 %s149, 1
          %s1463 = smul.addr %s1462, 64
          %s1464 = scalar_lea.vmem [#allocation2], %s1463
          %1465 = dma.done %s1461, 1024
        $region48: #{compute_cost_matrices.1} parent=43 // pred_fallthru
          _
      $region44: #{compute_cost_matrices.1} parent=5 // pred_fallthru
        _
    $region6: #{compute_cost_matrices.1} parent=1 // loop_footer
      %s17 = sadd.s32 1, %s13
    $region7: #{compute_cost_matrices.1} parent=1 // loop_footer_branch
      %12 = sbr.rel target = $region3
    $region8: #{compute_cost_matrices.1} parent=1 // loop_exit
      _
    %1466 = vsyncpa [#allocation3], 1
    %s1467 = scalar_lea.sflag [#allocation3], 1
    %1468 = vsyncpa %s1467, 1

</llo_original>
